<compile_context>
chip_gen: v7x
topology: tpu7x:2x2x1
jax: 0.10.0
libtpu: 0.0.40
codegen_flags: <defaults>
</compile_context>

<pallas_src>
import math

import jax
import jax.numpy as jnp
from jax.experimental import pallas as pl
from jax.experimental.pallas import tpu as pltpu

_NEG_INF = -1e9


# ----------------------------------------------------------------------------
# Fused kernel: encoder layer (CLS-only queries) + MultiModel head
# One grid step processes TB batch rows.
# ----------------------------------------------------------------------------
def fused_encoder_head_kernel(x_ref, maskb_ref,
                              wq_ref, bq_ref, wk_ref, bk_ref, wv_ref, bv_ref,
                              wo_ref, bo_ref, w1_ref, b1_ref, w2_ref, b2_ref,
                              g1_ref, be1_ref, g2_ref, be2_ref,
                              lw_ref, lb_ref,
                              o_ref):
    TB, S, H = x_ref.shape

    def mm(a, w_ref):
        # bf16 MXU operands (weights arrive pre-cast to bf16), f32 accumulation.
        return jnp.dot(a.astype(jnp.bfloat16), w_ref[...],
                       preferred_element_type=jnp.float32)

    def layernorm(v, g_ref, b_ref):
        mu = jnp.mean(v, axis=-1, keepdims=True)
        var = jnp.mean((v - mu) ** 2, axis=-1, keepdims=True)
        return (v - mu) * jax.lax.rsqrt(var + 1e-12) * g_ref[...] + b_ref[...]

    # Activations stay bf16 until they feed f32 math (residual / layernorm).
    xf = x_ref[...].reshape(TB * S, H)                      # (TB*S, H) bf16

    # ---- K/V projections: the only per-token matmuls needed ----------------
    k = (mm(xf, wk_ref) + bk_ref[...]).astype(jnp.bfloat16).reshape(TB, S, H)
    v = (mm(xf, wv_ref) + bv_ref[...]).astype(jnp.bfloat16).reshape(TB, S, H)

    # ---- CLS-only query / attention / FFN --------------------------------
    # Only hidden row 0 is consumed by the head, so everything downstream of
    # K/V runs on (TB, H) instead of (TB*S, H).
    # TODO(synk): if real multi-layer BERT layers get stacked in here later,
    # apply the CLS-only restriction to the final layer only.
    x_cls = x_ref[:, 0, :]                                   # (TB, H) bf16
    # 1/sqrt(H) attention scale is folded into wq/bq on the host.
    q = (mm(x_cls, wq_ref) + bq_ref[...]).astype(jnp.bfloat16).reshape(TB, 1, H)

    scores = jnp.einsum("bqh,bkh->bqk", q, k,
                        preferred_element_type=jnp.float32)  # (TB, 1, S)
    scores = scores + maskb_ref[...]                         # additive mask bias
    scores = scores - jnp.max(scores, axis=-1, keepdims=True)
    p = jnp.exp(scores)
    p = p / jnp.sum(p, axis=-1, keepdims=True)               # exact: tiny tensor

    ctx = jnp.einsum("bqk,bkh->bqh", p.astype(jnp.bfloat16), v,
                     preferred_element_type=jnp.float32).reshape(TB, H)
    attn = mm(ctx, wo_ref) + bo_ref[...]                      # (TB, H)
    h = layernorm(x_cls.astype(jnp.float32) + attn, g1_ref, be1_ref)

    f = mm(h, w1_ref) + b1_ref[...]
    f = jax.nn.gelu(f, approximate=True).astype(jnp.bfloat16)
    f = mm(f, w2_ref) + b2_ref[...]
    cls = layernorm(h + f, g2_ref, be2_ref)                   # (TB, H)

    # ---- MultiModel head: dropout(eval)=identity -> Linear -> Softmax ------
    logits = mm(cls, lw_ref) + lb_ref[...]                    # (TB, LP) lane-dense
    z = logits - jnp.max(logits, axis=-1, keepdims=True)
    e = jnp.exp(z)
    probs = e / jnp.sum(e, axis=-1, keepdims=True)            # exact divide
    o_ref[...] = probs.reshape(o_ref.shape).astype(o_ref.dtype)


# ----------------------------------------------------------------------------
# Wrapper
# ----------------------------------------------------------------------------
def _vmem_capacity_bytes():
    try:
        cap = int(pltpu.get_tpu_info().vmem_capacity_bytes)
        if cap > 0:
            return cap
    except Exception:
        pass
    return 64 * 1024 * 1024      # conservative: v7x per-TensorCore VMEM


def _pick_tb(batch, seq, vmem_cap_bytes):
    # Target ~1024 token-rows of K/V work per grid step on 128 MiB parts
    # (v5e/v6e), ~512 on 64 MiB parts (v7x); then keep >= 2 grid steps so the
    # "parallel" axis can shard across v7x's two TensorCores.
    rows_target = 1024 if vmem_cap_bytes >= (100 << 20) else 512
    tb = min(batch, max(1, rows_target // seq))
    if batch >= 2:
        tb = max(1, min(tb, batch // 2))
    while batch % tb:
        tb -= 1
    return tb


def multimodel_forward(input_ids, attention_mask, params):
    B, S = input_ids.shape
    H = params["word_emb"].shape[1]
    L = params["lin_w"].shape[1]

    # Embedding lookup (gather) stays in plain JAX; activations travel as bf16
    # (accumulation inside the kernel stays f32).
    emb = (params["word_emb"][input_ids] +
           params["pos_emb"][None, :, :]).astype(jnp.bfloat16)
    mask_bias = ((1.0 - attention_mask.astype(jnp.float32)) * _NEG_INF
                 ).reshape(B, 1, S)

    # Lane-dense classifier output: pad num_labels to a multiple of 128 lanes;
    # padded labels get a -1e9 bias so their softmax probability is exactly 0,
    # and the wrapper slices back to L.
    lp = max(128, ((L + 127) // 128) * 128)
    lw = jnp.zeros((H, lp), jnp.float32).at[:, :L].set(params["lin_w"])
    lb = jnp.full((1, lp), _NEG_INF, jnp.float32).at[:, :L].set(params["lin_b"])

    # Fold the attention scale into the query projection (free inside the kernel).
    scale = 1.0 / math.sqrt(H)
    bf = lambda a: a.astype(jnp.bfloat16)
    weights = [
        bf(params["wq"] * scale), params["bq"] * scale,
        bf(params["wk"]), params["bk"],
        bf(params["wv"]), params["bv"],
        bf(params["wo"]), params["bo"],
        bf(params["w1"]), params["b1"],
        bf(params["w2"]), params["b2"],
        params["g1"], params["be1"], params["g2"], params["be2"],
        bf(lw), lb,
    ]

    vmem_cap = _vmem_capacity_bytes()
    tb = _pick_tb(B, S, vmem_cap)

    def weight_spec(arr):
        nd = arr.ndim
        # Constant index_map -> the block never changes; hold the resident
        # weight set in a single VMEM buffer (no silent 2x double-buffering).
        return pl.BlockSpec(arr.shape, lambda b: (0,) * nd,
                            pipeline_mode=pl.Buffered(1))

    in_specs = [
        pl.BlockSpec((tb, S, H), lambda b: (b, 0, 0)),     # activations (bf16)
        pl.BlockSpec((tb, 1, S), lambda b: (b, 0, 0)),     # additive mask bias
    ] + [weight_spec(w) for w in weights]

    out = pl.pallas_call(
        fused_encoder_head_kernel,
        out_shape=jax.ShapeDtypeStruct((B, 1, lp), jnp.float32),
        grid=(B // tb,),
        in_specs=in_specs,
        out_specs=pl.BlockSpec((tb, 1, lp), lambda b: (b, 0, 0)),
        compiler_params=pltpu.CompilerParams(
            dimension_semantics=("parallel",),
            # ~75% of physical per-core VMEM: headroom for semaphores and
            # compiler scratch (v7x: ~48 MiB, v5e/v6e: ~96 MiB).
            vmem_limit_bytes=vmem_cap * 3 // 4),
    )(emb, mask_bias, *weights)
    return out[:, 0, :L]


# ----------------------------------------------------------------------------
# Pure-JAX reference mirroring the original module math (bf16 matmul operands,
# f32 accumulation / elementwise math).
# ----------------------------------------------------------------------------
def reference_forward(input_ids, attention_mask, p):
    def mm(a, w):
        return jnp.dot(a.astype(jnp.bfloat16), w.astype(jnp.bfloat16),
                       preferred_element_type=jnp.float32)

    def layernorm(v, g, b):
        mu = jnp.mean(v, axis=-1, keepdims=True)
        var = jnp.mean((v - mu) ** 2, axis=-1, keepdims=True)
        return (v - mu) * jax.lax.rsqrt(var + 1e-12) * g + b

    B, S = input_ids.shape
    H = p["word_emb"].shape[1]
    emb = (p["word_emb"][input_ids] + p["pos_emb"][None, :, :]
           ).astype(jnp.bfloat16).astype(jnp.float32)
    mask_bias = ((1.0 - attention_mask.astype(jnp.float32)) * _NEG_INF
                 ).reshape(B, 1, S)

    x = emb.reshape(B * S, H)
    q = (mm(x, p["wq"]) + p["bq"]).reshape(B, S, H)
    k = (mm(x, p["wk"]) + p["bk"]).reshape(B, S, H)
    v = (mm(x, p["wv"]) + p["bv"]).reshape(B, S, H)
    scores = jnp.einsum("bqh,bkh->bqk", q.astype(jnp.bfloat16),
                        k.astype(jnp.bfloat16),
                        preferred_element_type=jnp.float32) / math.sqrt(H)
    a = jax.nn.softmax(scores + mask_bias, axis=-1)
    ctx = jnp.einsum("bqk,bkh->bqh", a.astype(jnp.bfloat16),
                     v.astype(jnp.bfloat16),
                     preferred_element_type=jnp.float32).reshape(B * S, H)
    h = layernorm(x + mm(ctx, p["wo"]) + p["bo"], p["g1"], p["be1"])
    f = jax.nn.gelu(mm(h, p["w1"]) + p["b1"], approximate=True)
    hid = layernorm(h + mm(f, p["w2"]) + p["b2"], p["g2"], p["be2"])

    cls = hid.reshape(B, S, H)[:, 0, :]
    logits = mm(cls, p["lin_w"]) + p["lin_b"]
    return jax.nn.softmax(logits, axis=1)


# ----------------------------------------------------------------------------
# Deterministic parameter construction
# ----------------------------------------------------------------------------
def make_params(key, vocab, seq, hidden, ffn, num_labels):
    ks = jax.random.split(key, 16)
    n = lambda k, shape, s=0.02: (jax.random.normal(k, shape, jnp.float32) * s)
    return {
        "word_emb": n(ks[0], (vocab, hidden)),
        "pos_emb":  n(ks[1], (seq, hidden)),
        "wq": n(ks[2], (hidden, hidden)), "bq": jnp.zeros((1, hidden), jnp.float32),
        "wk": n(ks[3], (hidden, hidden)), "bk": jnp.zeros((1, hidden), jnp.float32),
        "wv": n(ks[4], (hidden, hidden)), "bv": jnp.zeros((1, hidden), jnp.float32),
        "wo": n(ks[5], (hidden, hidden)), "bo": jnp.zeros((1, hidden), jnp.float32),
        "w1": n(ks[6], (hidden, ffn)),    "b1": jnp.zeros((1, ffn), jnp.float32),
        "w2": n(ks[7], (ffn, hidden)),    "b2": jnp.zeros((1, hidden), jnp.float32),
        "g1": jnp.ones((1, hidden), jnp.float32), "be1": jnp.zeros((1, hidden), jnp.float32),
        "g2": jnp.ones((1, hidden), jnp.float32), "be2": jnp.zeros((1, hidden), jnp.float32),
        # MultiModel's own parameters: nn.Linear(hidden_size, num_labels)
        "lin_w": n(ks[8], (hidden, num_labels), 0.05),
        "lin_b": n(ks[9], (1, num_labels), 0.05),
    }


if __name__ == "__main__":
    B, S, H, FFN, L, VOCAB = 2, 8, 32, 64, 4, 100

    key = jax.random.PRNGKey(0)
    k_ids, k_params = jax.random.split(key)

    input_ids = jax.random.randint(k_ids, (B, S), 0, VOCAB, dtype=jnp.int32)
    attention_mask = jnp.array(
        [[1] * S, [1] * (S - 2) + [0, 0]], dtype=jnp.int32)  # second row padded

    params = make_params(k_params, VOCAB, S, H, FFN, L)

    out = jax.block_until_ready(
        multimodel_forward(input_ids, attention_mask, params))
    ref = reference_forward(input_ids, attention_mask, params)

    assert out.shape == (B, L)
    assert jnp.allclose(jnp.sum(out, axis=1), 1.0, atol=2e-3), jnp.sum(out, axis=1)
    max_err = jnp.max(jnp.abs(out - ref))
    assert jnp.allclose(out, ref, atol=2e-3, rtol=1e-2), f"max abs err {max_err}"

    print("KERNEL_OK")
</pallas_src>

<mosaic_0001>
module attributes {stable_mosaic.version = 11 : i64} {
  func.func @fused_encoder_head_kernel(%arg0: i32, %arg1: memref<1x8x32xbf16, #tpu.memory_space<vmem>>, %arg2: memref<1x1x8xf32, #tpu.memory_space<vmem>>, %arg3: memref<32x32xbf16, #tpu.memory_space<vmem>>, %arg4: memref<1x32xf32, #tpu.memory_space<vmem>>, %arg5: memref<32x32xbf16, #tpu.memory_space<vmem>>, %arg6: memref<1x32xf32, #tpu.memory_space<vmem>>, %arg7: memref<32x32xbf16, #tpu.memory_space<vmem>>, %arg8: memref<1x32xf32, #tpu.memory_space<vmem>>, %arg9: memref<32x32xbf16, #tpu.memory_space<vmem>>, %arg10: memref<1x32xf32, #tpu.memory_space<vmem>>, %arg11: memref<32x64xbf16, #tpu.memory_space<vmem>>, %arg12: memref<1x64xf32, #tpu.memory_space<vmem>>, %arg13: memref<64x32xbf16, #tpu.memory_space<vmem>>, %arg14: memref<1x32xf32, #tpu.memory_space<vmem>>, %arg15: memref<1x32xf32, #tpu.memory_space<vmem>>, %arg16: memref<1x32xf32, #tpu.memory_space<vmem>>, %arg17: memref<1x32xf32, #tpu.memory_space<vmem>>, %arg18: memref<1x32xf32, #tpu.memory_space<vmem>>, %arg19: memref<32x128xbf16, #tpu.memory_space<vmem>>, %arg20: memref<1x128xf32, #tpu.memory_space<vmem>>, %arg21: memref<1x1x128xf32, #tpu.memory_space<vmem>>) attributes {dimension_semantics = [#tpu.dimension_semantics<parallel>], iteration_bounds = array<i64: 2>, scalar_prefetch = 0 : i64, scratch_operands = 0 : i64, tpu.core_type = #tpu.core_type<tc>, window_params = [{transform_indices = @transform_0, window_bounds = array<i64: 1, 8, 32>}, {transform_indices = @transform_1, window_bounds = array<i64: 1, 1, 8>}, {pipeline_mode = #tpu.pipeline_mode<synchronous>, transform_indices = @transform_2, window_bounds = array<i64: 32, 32>}, {pipeline_mode = #tpu.pipeline_mode<synchronous>, transform_indices = @transform_3, window_bounds = array<i64: 1, 32>}, {pipeline_mode = #tpu.pipeline_mode<synchronous>, transform_indices = @transform_4, window_bounds = array<i64: 32, 32>}, {pipeline_mode = #tpu.pipeline_mode<synchronous>, transform_indices = @transform_5, window_bounds = array<i64: 1, 32>}, {pipeline_mode = #tpu.pipeline_mode<synchronous>, transform_indices = @transform_6, window_bounds = array<i64: 32, 32>}, {pipeline_mode = #tpu.pipeline_mode<synchronous>, transform_indices = @transform_7, window_bounds = array<i64: 1, 32>}, {pipeline_mode = #tpu.pipeline_mode<synchronous>, transform_indices = @transform_8, window_bounds = array<i64: 32, 32>}, {pipeline_mode = #tpu.pipeline_mode<synchronous>, transform_indices = @transform_9, window_bounds = array<i64: 1, 32>}, {pipeline_mode = #tpu.pipeline_mode<synchronous>, transform_indices = @transform_10, window_bounds = array<i64: 32, 64>}, {pipeline_mode = #tpu.pipeline_mode<synchronous>, transform_indices = @transform_11, window_bounds = array<i64: 1, 64>}, {pipeline_mode = #tpu.pipeline_mode<synchronous>, transform_indices = @transform_12, window_bounds = array<i64: 64, 32>}, {pipeline_mode = #tpu.pipeline_mode<synchronous>, transform_indices = @transform_13, window_bounds = array<i64: 1, 32>}, {pipeline_mode = #tpu.pipeline_mode<synchronous>, transform_indices = @transform_14, window_bounds = array<i64: 1, 32>}, {pipeline_mode = #tpu.pipeline_mode<synchronous>, transform_indices = @transform_15, window_bounds = array<i64: 1, 32>}, {pipeline_mode = #tpu.pipeline_mode<synchronous>, transform_indices = @transform_16, window_bounds = array<i64: 1, 32>}, {pipeline_mode = #tpu.pipeline_mode<synchronous>, transform_indices = @transform_17, window_bounds = array<i64: 1, 32>}, {pipeline_mode = #tpu.pipeline_mode<synchronous>, transform_indices = @transform_18, window_bounds = array<i64: 32, 128>}, {pipeline_mode = #tpu.pipeline_mode<synchronous>, transform_indices = @transform_19, window_bounds = array<i64: 1, 128>}, {transform_indices = @transform_20, window_bounds = array<i64: 1, 1, 128>}]} {
    %c0 = arith.constant 0 : index
    %c0_0 = arith.constant 0 : index
    %c0_1 = arith.constant 0 : index
    %0 = vector.load %arg1[%c0, %c0_0, %c0_1] : memref<1x8x32xbf16, #tpu.memory_space<vmem>>, vector<1x8x32xbf16>
    %1 = vector.shape_cast %0 : vector<1x8x32xbf16> to vector<8x32xbf16>
    %c0_2 = arith.constant 0 : index
    %c0_3 = arith.constant 0 : index
    %2 = vector.load %arg5[%c0_2, %c0_3] : memref<32x32xbf16, #tpu.memory_space<vmem>>, vector<32x32xbf16>
    %cst = arith.constant dense<0.000000e+00> : vector<8x32xf32>
    %3 = tpu.matmul %1, %2, %cst {dimension_numbers = #tpu.dot_dimension_numbers<[1], [0], [0], [1], [0, 0, 1, 1], [], []>} : vector<8x32xbf16>, vector<32x32xbf16>, vector<8x32xf32> -> vector<8x32xf32>
    %c0_4 = arith.constant 0 : index
    %c0_5 = arith.constant 0 : index
    %4 = vector.load %arg6[%c0_4, %c0_5] : memref<1x32xf32, #tpu.memory_space<vmem>>, vector<1x32xf32>
    %5 = vector.broadcast %4 : vector<1x32xf32> to vector<8x32xf32>
    %6 = arith.addf %3, %5 : vector<8x32xf32>
    %7 = arith.truncf %6 : vector<8x32xf32> to vector<8x32xbf16>
    %8 = vector.shape_cast %7 : vector<8x32xbf16> to vector<1x8x32xbf16>
    %c0_6 = arith.constant 0 : index
    %c0_7 = arith.constant 0 : index
    %9 = vector.load %arg7[%c0_6, %c0_7] : memref<32x32xbf16, #tpu.memory_space<vmem>>, vector<32x32xbf16>
    %cst_8 = arith.constant dense<0.000000e+00> : vector<8x32xf32>
    %10 = tpu.matmul %1, %9, %cst_8 {dimension_numbers = #tpu.dot_dimension_numbers<[1], [0], [0], [1], [0, 0, 1, 1], [], []>} : vector<8x32xbf16>, vector<32x32xbf16>, vector<8x32xf32> -> vector<8x32xf32>
    %c0_9 = arith.constant 0 : index
    %c0_10 = arith.constant 0 : index
    %11 = vector.load %arg8[%c0_9, %c0_10] : memref<1x32xf32, #tpu.memory_space<vmem>>, vector<1x32xf32>
    %12 = vector.broadcast %11 : vector<1x32xf32> to vector<8x32xf32>
    %13 = arith.addf %10, %12 : vector<8x32xf32>
    %14 = arith.truncf %13 : vector<8x32xf32> to vector<8x32xbf16>
    %15 = vector.shape_cast %14 : vector<8x32xbf16> to vector<1x8x32xbf16>
    %c0_11 = arith.constant 0 : index
    %c0_12 = arith.constant 0 : index
    %c0_13 = arith.constant 0 : index
    %16 = vector.load %arg1[%c0_11, %c0_12, %c0_13] : memref<1x8x32xbf16, #tpu.memory_space<vmem>>, vector<1x1x32xbf16>
    %17 = vector.shape_cast %16 : vector<1x1x32xbf16> to vector<1x32xbf16>
    %c0_14 = arith.constant 0 : index
    %c0_15 = arith.constant 0 : index
    %18 = vector.load %arg3[%c0_14, %c0_15] : memref<32x32xbf16, #tpu.memory_space<vmem>>, vector<32x32xbf16>
    %cst_16 = arith.constant dense<0.000000e+00> : vector<1x32xf32>
    %19 = tpu.matmul %17, %18, %cst_16 {dimension_numbers = #tpu.dot_dimension_numbers<[1], [0], [0], [1], [0, 0, 1, 1], [], []>} : vector<1x32xbf16>, vector<32x32xbf16>, vector<1x32xf32> -> vector<1x32xf32>
    %c0_17 = arith.constant 0 : index
    %c0_18 = arith.constant 0 : index
    %20 = vector.load %arg4[%c0_17, %c0_18] : memref<1x32xf32, #tpu.memory_space<vmem>>, vector<1x32xf32>
    %21 = arith.addf %19, %20 : vector<1x32xf32>
    %22 = arith.truncf %21 : vector<1x32xf32> to vector<1x32xbf16>
    %23 = vector.shape_cast %22 : vector<1x32xbf16> to vector<1x1x32xbf16>
    "tpu.trace_start"() <{level = 10 : i32, message = "bqh,bkh->bqk"}> : () -> ()
    %cst_19 = arith.constant dense<0.000000e+00> : vector<1x1x8xf32>
    %24 = tpu.matmul %23, %8, %cst_19 {dimension_numbers = #tpu.dot_dimension_numbers<[2], [2], [1], [1], [0, 0, 0, 1, 1, 1], [0], [0]>} : vector<1x1x32xbf16>, vector<1x8x32xbf16>, vector<1x1x8xf32> -> vector<1x1x8xf32>
    "tpu.trace_stop"() : () -> ()
    %c0_20 = arith.constant 0 : index
    %c0_21 = arith.constant 0 : index
    %c0_22 = arith.constant 0 : index
    %25 = vector.load %arg2[%c0_20, %c0_21, %c0_22] : memref<1x1x8xf32, #tpu.memory_space<vmem>>, vector<1x1x8xf32>
    %26 = arith.addf %24, %25 : vector<1x1x8xf32>
    %cst_23 = arith.constant dense<0xFF800000> : vector<1x1xf32>
    %27 = vector.multi_reduction <maximumf>, %26, %cst_23 [2] : vector<1x1x8xf32> to vector<1x1xf32>
    %28 = vector.shape_cast %27 : vector<1x1xf32> to vector<1x1x1xf32>
    %29 = vector.broadcast %28 : vector<1x1x1xf32> to vector<1x1x8xf32>
    %30 = arith.subf %26, %29 : vector<1x1x8xf32>
    %31 = math.exp %30 : vector<1x1x8xf32>
    %cst_24 = arith.constant dense<0.000000e+00> : vector<1x1xf32>
    %32 = vector.multi_reduction <add>, %31, %cst_24 [2] : vector<1x1x8xf32> to vector<1x1xf32>
    %33 = vector.shape_cast %32 : vector<1x1xf32> to vector<1x1x1xf32>
    %34 = vector.broadcast %33 : vector<1x1x1xf32> to vector<1x1x8xf32>
    %35 = arith.divf %31, %34 : vector<1x1x8xf32>
    %36 = arith.truncf %35 : vector<1x1x8xf32> to vector<1x1x8xbf16>
    "tpu.trace_start"() <{level = 10 : i32, message = "bqk,bkh->bqh"}> : () -> ()
    %cst_25 = arith.constant dense<0.000000e+00> : vector<1x1x32xf32>
    %37 = tpu.matmul %36, %15, %cst_25 {dimension_numbers = #tpu.dot_dimension_numbers<[2], [1], [1], [2], [0, 0, 0, 1, 1, 2], [0], [0]>} : vector<1x1x8xbf16>, vector<1x8x32xbf16>, vector<1x1x32xf32> -> vector<1x1x32xf32>
    "tpu.trace_stop"() : () -> ()
    %38 = vector.shape_cast %37 : vector<1x1x32xf32> to vector<1x32xf32>
    %39 = arith.truncf %38 : vector<1x32xf32> to vector<1x32xbf16>
    %c0_26 = arith.constant 0 : index
    %c0_27 = arith.constant 0 : index
    %40 = vector.load %arg9[%c0_26, %c0_27] : memref<32x32xbf16, #tpu.memory_space<vmem>>, vector<32x32xbf16>
    %cst_28 = arith.constant dense<0.000000e+00> : vector<1x32xf32>
    %41 = tpu.matmul %39, %40, %cst_28 {dimension_numbers = #tpu.dot_dimension_numbers<[1], [0], [0], [1], [0, 0, 1, 1], [], []>} : vector<1x32xbf16>, vector<32x32xbf16>, vector<1x32xf32> -> vector<1x32xf32>
    %c0_29 = arith.constant 0 : index
    %c0_30 = arith.constant 0 : index
    %42 = vector.load %arg10[%c0_29, %c0_30] : memref<1x32xf32, #tpu.memory_space<vmem>>, vector<1x32xf32>
    %43 = arith.addf %41, %42 : vector<1x32xf32>
    %44 = arith.extf %17 : vector<1x32xbf16> to vector<1x32xf32>
    %45 = arith.addf %44, %43 : vector<1x32xf32>
    %cst_31 = arith.constant dense<0.000000e+00> : vector<1xf32>
    %46 = vector.multi_reduction <add>, %45, %cst_31 [1] : vector<1x32xf32> to vector<1xf32>
    %47 = vector.shape_cast %46 : vector<1xf32> to vector<1x1xf32>
    %cst_32 = arith.constant 3.200000e+01 : f32
    %48 = vector.broadcast %cst_32 : f32 to vector<1x1xf32>
    %49 = arith.divf %47, %48 : vector<1x1xf32>
    %50 = vector.broadcast %49 : vector<1x1xf32> to vector<1x32xf32>
    %51 = arith.subf %45, %50 : vector<1x32xf32>
    %52 = arith.mulf %51, %51 : vector<1x32xf32>
    %cst_33 = arith.constant dense<0.000000e+00> : vector<1xf32>
    %53 = vector.multi_reduction <add>, %52, %cst_33 [1] : vector<1x32xf32> to vector<1xf32>
    %54 = vector.shape_cast %53 : vector<1xf32> to vector<1x1xf32>
    %cst_34 = arith.constant 3.200000e+01 : f32
    %55 = vector.broadcast %cst_34 : f32 to vector<1x1xf32>
    %56 = arith.divf %54, %55 : vector<1x1xf32>
    %57 = vector.broadcast %49 : vector<1x1xf32> to vector<1x32xf32>
    %58 = arith.subf %45, %57 : vector<1x32xf32>
    %cst_35 = arith.constant 9.99999996E-13 : f32
    %59 = vector.broadcast %cst_35 : f32 to vector<1x1xf32>
    %60 = arith.addf %56, %59 : vector<1x1xf32>
    %61 = math.rsqrt %60 : vector<1x1xf32>
    %62 = vector.broadcast %61 : vector<1x1xf32> to vector<1x32xf32>
    %63 = arith.mulf %58, %62 : vector<1x32xf32>
    %c0_36 = arith.constant 0 : index
    %c0_37 = arith.constant 0 : index
    %64 = vector.load %arg15[%c0_36, %c0_37] : memref<1x32xf32, #tpu.memory_space<vmem>>, vector<1x32xf32>
    %65 = arith.mulf %63, %64 : vector<1x32xf32>
    %c0_38 = arith.constant 0 : index
    %c0_39 = arith.constant 0 : index
    %66 = vector.load %arg16[%c0_38, %c0_39] : memref<1x32xf32, #tpu.memory_space<vmem>>, vector<1x32xf32>
    %67 = arith.addf %65, %66 : vector<1x32xf32>
    %68 = arith.truncf %67 : vector<1x32xf32> to vector<1x32xbf16>
    %c0_40 = arith.constant 0 : index
    %c0_41 = arith.constant 0 : index
    %69 = vector.load %arg11[%c0_40, %c0_41] : memref<32x64xbf16, #tpu.memory_space<vmem>>, vector<32x64xbf16>
    %cst_42 = arith.constant dense<0.000000e+00> : vector<1x64xf32>
    %70 = tpu.matmul %68, %69, %cst_42 {dimension_numbers = #tpu.dot_dimension_numbers<[1], [0], [0], [1], [0, 0, 1, 1], [], []>} : vector<1x32xbf16>, vector<32x64xbf16>, vector<1x64xf32> -> vector<1x64xf32>
    %c0_43 = arith.constant 0 : index
    %c0_44 = arith.constant 0 : index
    %71 = vector.load %arg12[%c0_43, %c0_44] : memref<1x64xf32, #tpu.memory_space<vmem>>, vector<1x64xf32>
    %72 = arith.addf %70, %71 : vector<1x64xf32>
    %73 = arith.mulf %72, %72 : vector<1x64xf32>
    %74 = arith.mulf %72, %73 : vector<1x64xf32>
    %cst_45 = arith.constant 4.471500e-02 : f32
    %75 = vector.broadcast %cst_45 : f32 to vector<1x64xf32>
    %76 = arith.mulf %75, %74 : vector<1x64xf32>
    %77 = arith.addf %72, %76 : vector<1x64xf32>
    %cst_46 = arith.constant 0.797884583 : f32
    %78 = vector.broadcast %cst_46 : f32 to vector<1x64xf32>
    %79 = arith.mulf %78, %77 : vector<1x64xf32>
    %80 = math.tanh %79 : vector<1x64xf32>
    %cst_47 = arith.constant 1.000000e+00 : f32
    %81 = vector.broadcast %cst_47 : f32 to vector<1x64xf32>
    %82 = arith.addf %81, %80 : vector<1x64xf32>
    %cst_48 = arith.constant 5.000000e-01 : f32
    %83 = vector.broadcast %cst_48 : f32 to vector<1x64xf32>
    %84 = arith.mulf %83, %82 : vector<1x64xf32>
    %85 = arith.mulf %72, %84 : vector<1x64xf32>
    %86 = arith.truncf %85 : vector<1x64xf32> to vector<1x64xbf16>
    %c0_49 = arith.constant 0 : index
    %c0_50 = arith.constant 0 : index
    %87 = vector.load %arg13[%c0_49, %c0_50] : memref<64x32xbf16, #tpu.memory_space<vmem>>, vector<64x32xbf16>
    %cst_51 = arith.constant dense<0.000000e+00> : vector<1x32xf32>
    %88 = tpu.matmul %86, %87, %cst_51 {dimension_numbers = #tpu.dot_dimension_numbers<[1], [0], [0], [1], [0, 0, 1, 1], [], []>} : vector<1x64xbf16>, vector<64x32xbf16>, vector<1x32xf32> -> vector<1x32xf32>
    %c0_52 = arith.constant 0 : index
    %c0_53 = arith.constant 0 : index
    %89 = vector.load %arg14[%c0_52, %c0_53] : memref<1x32xf32, #tpu.memory_space<vmem>>, vector<1x32xf32>
    %90 = arith.addf %88, %89 : vector<1x32xf32>
    %91 = arith.addf %67, %90 : vector<1x32xf32>
    %cst_54 = arith.constant dense<0.000000e+00> : vector<1xf32>
    %92 = vector.multi_reduction <add>, %91, %cst_54 [1] : vector<1x32xf32> to vector<1xf32>
    %93 = vector.shape_cast %92 : vector<1xf32> to vector<1x1xf32>
    %cst_55 = arith.constant 3.200000e+01 : f32
    %94 = vector.broadcast %cst_55 : f32 to vector<1x1xf32>
    %95 = arith.divf %93, %94 : vector<1x1xf32>
    %96 = vector.broadcast %95 : vector<1x1xf32> to vector<1x32xf32>
    %97 = arith.subf %91, %96 : vector<1x32xf32>
    %98 = arith.mulf %97, %97 : vector<1x32xf32>
    %cst_56 = arith.constant dense<0.000000e+00> : vector<1xf32>
    %99 = vector.multi_reduction <add>, %98, %cst_56 [1] : vector<1x32xf32> to vector<1xf32>
    %100 = vector.shape_cast %99 : vector<1xf32> to vector<1x1xf32>
    %cst_57 = arith.constant 3.200000e+01 : f32
    %101 = vector.broadcast %cst_57 : f32 to vector<1x1xf32>
    %102 = arith.divf %100, %101 : vector<1x1xf32>
    %103 = vector.broadcast %95 : vector<1x1xf32> to vector<1x32xf32>
    %104 = arith.subf %91, %103 : vector<1x32xf32>
    %cst_58 = arith.constant 9.99999996E-13 : f32
    %105 = vector.broadcast %cst_58 : f32 to vector<1x1xf32>
    %106 = arith.addf %102, %105 : vector<1x1xf32>
    %107 = math.rsqrt %106 : vector<1x1xf32>
    %108 = vector.broadcast %107 : vector<1x1xf32> to vector<1x32xf32>
    %109 = arith.mulf %104, %108 : vector<1x32xf32>
    %c0_59 = arith.constant 0 : index
    %c0_60 = arith.constant 0 : index
    %110 = vector.load %arg17[%c0_59, %c0_60] : memref<1x32xf32, #tpu.memory_space<vmem>>, vector<1x32xf32>
    %111 = arith.mulf %109, %110 : vector<1x32xf32>
    %c0_61 = arith.constant 0 : index
    %c0_62 = arith.constant 0 : index
    %112 = vector.load %arg18[%c0_61, %c0_62] : memref<1x32xf32, #tpu.memory_space<vmem>>, vector<1x32xf32>
    %113 = arith.addf %111, %112 : vector<1x32xf32>
    %114 = arith.truncf %113 : vector<1x32xf32> to vector<1x32xbf16>
    %c0_63 = arith.constant 0 : index
    %c0_64 = arith.constant 0 : index
    %115 = vector.load %arg19[%c0_63, %c0_64] : memref<32x128xbf16, #tpu.memory_space<vmem>>, vector<32x128xbf16>
    %cst_65 = arith.constant dense<0.000000e+00> : vector<1x128xf32>
    %116 = tpu.matmul %114, %115, %cst_65 {dimension_numbers = #tpu.dot_dimension_numbers<[1], [0], [0], [1], [0, 0, 1, 1], [], []>} : vector<1x32xbf16>, vector<32x128xbf16>, vector<1x128xf32> -> vector<1x128xf32>
    %c0_66 = arith.constant 0 : index
    %c0_67 = arith.constant 0 : index
    %117 = vector.load %arg20[%c0_66, %c0_67] : memref<1x128xf32, #tpu.memory_space<vmem>>, vector<1x128xf32>
    %118 = arith.addf %116, %117 : vector<1x128xf32>
    %cst_68 = arith.constant dense<0xFF800000> : vector<1xf32>
    %119 = vector.multi_reduction <maximumf>, %118, %cst_68 [1] : vector<1x128xf32> to vector<1xf32>
    %120 = vector.shape_cast %119 : vector<1xf32> to vector<1x1xf32>
    %121 = vector.broadcast %120 : vector<1x1xf32> to vector<1x128xf32>
    %122 = arith.subf %118, %121 : vector<1x128xf32>
    %123 = math.exp %122 : vector<1x128xf32>
    %cst_69 = arith.constant dense<0.000000e+00> : vector<1xf32>
    %124 = vector.multi_reduction <add>, %123, %cst_69 [1] : vector<1x128xf32> to vector<1xf32>
    %125 = vector.shape_cast %124 : vector<1xf32> to vector<1x1xf32>
    %126 = vector.broadcast %125 : vector<1x1xf32> to vector<1x128xf32>
    %127 = arith.divf %123, %126 : vector<1x128xf32>
    %128 = vector.shape_cast %127 : vector<1x128xf32> to vector<1x1x128xf32>
    %c0_70 = arith.constant 0 : index
    %c0_71 = arith.constant 0 : index
    %c0_72 = arith.constant 0 : index
    %129 = vector.load %arg21[%c0_70, %c0_71, %c0_72] : memref<1x1x128xf32, #tpu.memory_space<vmem>>, vector<1x1x128xf32>
    tpu.vector_store %arg21[%c0_70, %c0_71, %c0_72], %128 {strides = array<i32>} : memref<1x1x128xf32, #tpu.memory_space<vmem>>, vector<1x1x128xf32>,
    return
  }
  func.func @transform_0(%arg0: i32) -> (i32, i32, i32) {
    %c0_i32 = arith.constant 0 : i32
    %c0_i32_0 = arith.constant 0 : i32
    %c0_i32_1 = arith.constant 0 : i32
    return %arg0, %c0_i32, %c0_i32_0 : i32, i32, i32
  }
  func.func @transform_1(%arg0: i32) -> (i32, i32, i32) {
    %c0_i32 = arith.constant 0 : i32
    %c0_i32_0 = arith.constant 0 : i32
    %c0_i32_1 = arith.constant 0 : i32
    return %arg0, %c0_i32, %c0_i32_0 : i32, i32, i32
  }
  func.func @transform_2(%arg0: i32) -> (i32, i32) {
    %c0_i32 = arith.constant 0 : i32
    %c0_i32_0 = arith.constant 0 : i32
    %c0_i32_1 = arith.constant 0 : i32
    return %c0_i32, %c0_i32_0 : i32, i32
  }
  func.func @transform_3(%arg0: i32) -> (i32, i32) {
    %c0_i32 = arith.constant 0 : i32
    %c0_i32_0 = arith.constant 0 : i32
    %c0_i32_1 = arith.constant 0 : i32
    return %c0_i32, %c0_i32_0 : i32, i32
  }
  func.func @transform_4(%arg0: i32) -> (i32, i32) {
    %c0_i32 = arith.constant 0 : i32
    %c0_i32_0 = arith.constant 0 : i32
    %c0_i32_1 = arith.constant 0 : i32
    return %c0_i32, %c0_i32_0 : i32, i32
  }
  func.func @transform_5(%arg0: i32) -> (i32, i32) {
    %c0_i32 = arith.constant 0 : i32
    %c0_i32_0 = arith.constant 0 : i32
    %c0_i32_1 = arith.constant 0 : i32
    return %c0_i32, %c0_i32_0 : i32, i32
  }
  func.func @transform_6(%arg0: i32) -> (i32, i32) {
    %c0_i32 = arith.constant 0 : i32
    %c0_i32_0 = arith.constant 0 : i32
    %c0_i32_1 = arith.constant 0 : i32
    return %c0_i32, %c0_i32_0 : i32, i32
  }
  func.func @transform_7(%arg0: i32) -> (i32, i32) {
    %c0_i32 = arith.constant 0 : i32
    %c0_i32_0 = arith.constant 0 : i32
    %c0_i32_1 = arith.constant 0 : i32
    return %c0_i32, %c0_i32_0 : i32, i32
  }
  func.func @transform_8(%arg0: i32) -> (i32, i32) {
    %c0_i32 = arith.constant 0 : i32
    %c0_i32_0 = arith.constant 0 : i32
    %c0_i32_1 = arith.constant 0 : i32
    return %c0_i32, %c0_i32_0 : i32, i32
  }
  func.func @transform_9(%arg0: i32) -> (i32, i32) {
    %c0_i32 = arith.constant 0 : i32
    %c0_i32_0 = arith.constant 0 : i32
    %c0_i32_1 = arith.constant 0 : i32
    return %c0_i32, %c0_i32_0 : i32, i32
  }
  func.func @transform_10(%arg0: i32) -> (i32, i32) {
    %c0_i32 = arith.constant 0 : i32
    %c0_i32_0 = arith.constant 0 : i32
    %c0_i32_1 = arith.constant 0 : i32
    return %c0_i32, %c0_i32_0 : i32, i32
  }
  func.func @transform_11(%arg0: i32) -> (i32, i32) {
    %c0_i32 = arith.constant 0 : i32
    %c0_i32_0 = arith.constant 0 : i32
    %c0_i32_1 = arith.constant 0 : i32
    return %c0_i32, %c0_i32_0 : i32, i32
  }
  func.func @transform_12(%arg0: i32) -> (i32, i32) {
    %c0_i32 = arith.constant 0 : i32
    %c0_i32_0 = arith.constant 0 : i32
    %c0_i32_1 = arith.constant 0 : i32
    return %c0_i32, %c0_i32_0 : i32, i32
  }
  func.func @transform_13(%arg0: i32) -> (i32, i32) {
    %c0_i32 = arith.constant 0 : i32
    %c0_i32_0 = arith.constant 0 : i32
    %c0_i32_1 = arith.constant 0 : i32
    return %c0_i32, %c0_i32_0 : i32, i32
  }
  func.func @transform_14(%arg0: i32) -> (i32, i32) {
    %c0_i32 = arith.constant 0 : i32
    %c0_i32_0 = arith.constant 0 : i32
    %c0_i32_1 = arith.constant 0 : i32
    return %c0_i32, %c0_i32_0 : i32, i32
  }
  func.func @transform_15(%arg0: i32) -> (i32, i32) {
    %c0_i32 = arith.constant 0 : i32
    %c0_i32_0 = arith.constant 0 : i32
    %c0_i32_1 = arith.constant 0 : i32
    return %c0_i32, %c0_i32_0 : i32, i32
  }
  func.func @transform_16(%arg0: i32) -> (i32, i32) {
    %c0_i32 = arith.constant 0 : i32
    %c0_i32_0 = arith.constant 0 : i32
    %c0_i32_1 = arith.constant 0 : i32
    return %c0_i32, %c0_i32_0 : i32, i32
  }
  func.func @transform_17(%arg0: i32) -> (i32, i32) {
    %c0_i32 = arith.constant 0 : i32
    %c0_i32_0 = arith.constant 0 : i32
    %c0_i32_1 = arith.constant 0 : i32
    return %c0_i32, %c0_i32_0 : i32, i32
  }
  func.func @transform_18(%arg0: i32) -> (i32, i32) {
    %c0_i32 = arith.constant 0 : i32
    %c0_i32_0 = arith.constant 0 : i32
    %c0_i32_1 = arith.constant 0 : i32
    return %c0_i32, %c0_i32_0 : i32, i32
  }
  func.func @transform_19(%arg0: i32) -> (i32, i32) {
    %c0_i32 = arith.constant 0 : i32
    %c0_i32_0 = arith.constant 0 : i32
    %c0_i32_1 = arith.constant 0 : i32
    return %c0_i32, %c0_i32_0 : i32, i32
  }
  func.func @transform_20(%arg0: i32) -> (i32, i32, i32) {
    %c0_i32 = arith.constant 0 : i32
    %c0_i32_0 = arith.constant 0 : i32
    %c0_i32_1 = arith.constant 0 : i32
    return %arg0, %c0_i32, %c0_i32_0 : i32, i32, i32
  }
}

</mosaic_0001>

<llo_original>
// kernel: tpu_custom_call.1
$region0: #{tpu_custom_call.1}
  #allocation0 [shape = 'u32[]', space=smem, size = 0x4, offset = 0x4, fixed_abs, tag = 'smem constant byte address 0x4 - core index']
  #allocation1 [shape = 'u32[144,128]{1,0:T(1,128)}', space=vmem, size = 0x12000, scoped, tag = 'internal scratch']
  %s0 = inlined_call_operand.hbm [shape: bf16[2,8,32], index: 0, kind: input, shape index: {}]
  %s1 = inlined_call_operand.hbm [shape: f32[2,1,8], index: 1, kind: input, shape index: {}]
  %s2 = inlined_call_operand.vmem [shape: bf16[32,32], index: 2, kind: input, shape index: {}]
  %s3 = inlined_call_operand.vmem [shape: f32[1,32], index: 3, kind: input, shape index: {}]
  %s4 = inlined_call_operand.vmem [shape: bf16[32,32], index: 4, kind: input, shape index: {}]
  %s5 = inlined_call_operand.hbm [shape: f32[1,32], index: 5, kind: input, shape index: {}]
  %s6 = inlined_call_operand.vmem [shape: bf16[32,32], index: 6, kind: input, shape index: {}]
  %s7 = inlined_call_operand.hbm [shape: f32[1,32], index: 7, kind: input, shape index: {}]
  %s8 = inlined_call_operand.hbm [shape: bf16[32,32], index: 8, kind: input, shape index: {}]
  %s9 = inlined_call_operand.hbm [shape: f32[1,32], index: 9, kind: input, shape index: {}]
  %s10 = inlined_call_operand.vmem [shape: bf16[32,64], index: 10, kind: input, shape index: {}]
  %s11 = inlined_call_operand.hbm [shape: f32[1,64], index: 11, kind: input, shape index: {}]
  %s12 = inlined_call_operand.vmem [shape: bf16[64,32], index: 12, kind: input, shape index: {}]
  %s13 = inlined_call_operand.hbm [shape: f32[1,32], index: 13, kind: input, shape index: {}]
  %s14 = inlined_call_operand.vmem [shape: f32[1,32], index: 14, kind: input, shape index: {}]
  %s15 = inlined_call_operand.vmem [shape: f32[1,32], index: 15, kind: input, shape index: {}]
  %s16 = inlined_call_operand.vmem [shape: f32[1,32], index: 16, kind: input, shape index: {}]
  %s17 = inlined_call_operand.vmem [shape: f32[1,32], index: 17, kind: input, shape index: {}]
  %s18 = inlined_call_operand.vmem [shape: bf16[32,128], index: 18, kind: input, shape index: {}]
  %s19 = inlined_call_operand.vmem [shape: f32[1,128], index: 19, kind: input, shape index: {}]
  %s20 = inlined_call_operand.hbm [shape: f32[2,1,128], index: 20, kind: output, shape index: {}]
  %s21 = sld [smem:[#allocation0]]
  $region145: #{tpu_custom_call.1} parent=0
    _
  %s23 = ssub.s32 1, %s21
  %s24 = scalar_select 0, %s23, %s21
  $region1: #{tpu_custom_call.1} parent=0
    #allocation2 [shape = 'u8[4096]{0}', space=vmem, size = 0x1000, scoped, tag = 'input window, operand 0']
    #allocation3 [shape = 's32[2]{0}', space=sflag, size = 0x8, scoped, tag = 'scoped memory for tpu_custom_call.1']
    #allocation4 [shape = 's32[2]{0}', space=sflag, size = 0x8, scoped, tag = 'scoped memory for tpu_custom_call.1']
    #allocation5 [shape = 'u8[1024]{0}', space=vmem, size = 0x400, scoped, tag = 'input window, operand 1']
    #allocation6 [shape = 's32[2]{0}', space=sflag, size = 0x8, scoped, tag = 'scoped memory for tpu_custom_call.1']
    #allocation7 [shape = 'u8[512]{0}', space=vmem, size = 0x400, scoped, tag = 'input window, operand 5, single buffered']
    #allocation8 [shape = 'u8[512]{0}', space=vmem, size = 0x400, scoped, tag = 'input window, operand 7, single buffered']
    #allocation9 [shape = 's32[1]{0}', space=sflag, size = 0x4, scoped, tag = 'scoped memory for tpu_custom_call.1']
    #allocation10 [shape = 'u8[8192]{0}', space=vmem, size = 0x2000, scoped, tag = 'input window, operand 8, single buffered']
    #allocation11 [shape = 'u8[512]{0}', space=vmem, size = 0x400, scoped, tag = 'input window, operand 9, single buffered']
    #allocation12 [shape = 's32[1]{0}', space=sflag, size = 0x4, scoped, tag = 'scoped memory for tpu_custom_call.1']
    #allocation13 [shape = 'u8[512]{0}', space=vmem, size = 0x400, scoped, tag = 'input window, operand 11, single buffered']
    #allocation14 [shape = 'u8[512]{0}', space=vmem, size = 0x400, scoped, tag = 'input window, operand 13, single buffered']
    #allocation15 [shape = 's32[1]{0}', space=sflag, size = 0x4, scoped, tag = 'scoped memory for tpu_custom_call.1']
    #allocation16 [shape = 'u8[1024]{0}', space=vmem, size = 0x400, scoped, tag = 'output window, operand 0']
    %25 = vsyncpa [#allocation3], 0
    %s26 = scalar_lea.sflag [#allocation3], 1
    %27 = vsyncpa %s26, 0
    %28 = vsyncpa [#allocation6], 0
    %s29 = scalar_lea.sflag [#allocation6], 1
    %30 = vsyncpa %s29, 0
    %31 = vsyncpa [#allocation9], 0
    %32 = vsyncpa [#allocation12], 0
    %33 = vsyncpa [#allocation15], 0
    %34 = vsyncpa [#allocation4], 0
    %s35 = scalar_lea.sflag [#allocation4], 1
    %36 = vsyncpa %s35, 0
    loop: start=0, step=1, limit=4
    $region2: #{tpu_custom_call.1} parent=1 // loop_pre_header
      _
    $region3: #{tpu_custom_call.1} parent=1 // loop_header
      %s38 = sphi 0, %s42
      %p39 = scmp.ge.s32.totalorder %s38, 4
      %s48 = sphi 0, %s50
      %s51 = sphi 0, %s48
      %s52 = sphi 0, %s51
      %s68 = sphi 0, %s52
      %s74 = sphi 0, %s76
      %s77 = sphi 0, %s74
      %s78 = sphi 0, %s77
      %s94 = sphi 0, %s78
      %s98 = sphi 0, %s98
      %s100 = sphi 0, %s98
      %s101 = sphi 0, %s100
      %s115 = sphi 0, %s101
      %s119 = sphi 0, %s119
      %s121 = sphi 0, %s119
      %s122 = sphi 0, %s121
      %s136 = sphi 0, %s122
      %s140 = sphi 0, %s140
      %s142 = sphi 0, %s140
      %s143 = sphi 0, %s142
      %s157 = sphi 0, %s143
      %s161 = sphi 0, %s161
      %s163 = sphi 0, %s161
      %s164 = sphi 0, %s163
      %s178 = sphi 0, %s164
      %s182 = sphi 0, %s182
      %s184 = sphi 0, %s182
      %s185 = sphi 0, %s184
      %s199 = sphi 0, %s185
      %s203 = sphi 0, %s203
      %s205 = sphi 0, %s203
      %s206 = sphi 0, %s205
      %s220 = sphi 0, %s206
      %s224 = sphi 0, %s224
      %s226 = sphi 0, %s224
      %s227 = sphi 0, %s226
      %s241 = sphi 0, %s227
      %s245 = sphi 0, %s245
      %s247 = sphi 0, %s245
      %s248 = sphi 0, %s247
      %s262 = sphi 0, %s248
      %s266 = sphi 0, %s266
      %s268 = sphi 0, %s266
      %s269 = sphi 0, %s268
      %s283 = sphi 0, %s269
      %s287 = sphi 0, %s287
      %s289 = sphi 0, %s287
      %s290 = sphi 0, %s289
      %s304 = sphi 0, %s290
      %s308 = sphi 0, %s308
      %s310 = sphi 0, %s308
      %s311 = sphi 0, %s310
      %s325 = sphi 0, %s311
      %s329 = sphi 0, %s329
      %s331 = sphi 0, %s329
      %s332 = sphi 0, %s331
      %s346 = sphi 0, %s332
      %s350 = sphi 0, %s350
      %s352 = sphi 0, %s350
      %s353 = sphi 0, %s352
      %s367 = sphi 0, %s353
      %s371 = sphi 0, %s371
      %s373 = sphi 0, %s371
      %s374 = sphi 0, %s373
      %s388 = sphi 0, %s374
      %s392 = sphi 0, %s392
      %s394 = sphi 0, %s392
      %s395 = sphi 0, %s394
      %s409 = sphi 0, %s395
      %s413 = sphi 0, %s413
      %s415 = sphi 0, %s413
      %s416 = sphi 0, %s415
      %s430 = sphi 0, %s416
      %s434 = sphi 0, %s434
      %s436 = sphi 0, %s434
      %s437 = sphi 0, %s436
      %s451 = sphi 0, %s437
      %s455 = sphi 0, %s455
      %s457 = sphi 0, %s455
      %s458 = sphi 0, %s457
      %s472 = sphi 0, %s458
      %s478 = sphi 0, %s480
      %s481 = sphi 0, %s478
      %s482 = sphi 0, %s481
      %s498 = sphi 0, %s482
    $region4: #{tpu_custom_call.1} parent=1 // loop_header_branch
      %41 = sbr.rel (%p39) target = $region8
    $region5: #{tpu_custom_call.1} parent=1 // loop_body
      %s43 = ssub.s32 %s38, 1
      %s44 = ssub.s32 %s38, 2
      %s45 = sadd.s32 %s38, 1
      %s46 = ssub.s32 %s38, %s45
      %p47 = scmp.eq.s32.totalorder %s46, 0
      %s49 = sadd.s32 %s48, 1
      %s50 = scalar_select %p47, %s48, %s49
      %p53 = pneg %p47
      %p54 = scmp.eq.s32.totalorder %s38, 1
      %p55 = por %p53, %p54
      %p56 = scmp.ne.s32.totalorder %s48, %s51
      %p57 = scmp.eq.s32.totalorder %s38, 0
      %p58 = por %p56, %p57
      %p59 = scmp.ne.s32.totalorder %s48, %s51
      %p60 = scmp.eq.s32.totalorder %s43, 1
      %p61 = por %p59, %p60
      %p62 = scmp.ne.s32.totalorder %s51, %s52
      %p63 = scmp.eq.s32.totalorder %s43, 0
      %p64 = por %p62, %p63
      %p65 = scmp.ne.s32.totalorder %s51, %s52
      %p66 = scmp.eq.s32.totalorder %s44, 1
      %p67 = por %p65, %p66
      %p69 = scmp.ne.s32.totalorder %s52, %s68
      %p70 = scmp.eq.s32.totalorder %s44, 0
      %p71 = por %p69, %p70
      %s72 = ssub.s32 %s38, %s45
      %p73 = scmp.eq.s32.totalorder %s72, 0
      %s75 = sadd.s32 %s74, 1
      %s76 = scalar_select %p73, %s74, %s75
      %p79 = pneg %p73
      %p80 = scmp.eq.s32.totalorder %s38, 1
      %p81 = por %p79, %p80
      %p82 = scmp.ne.s32.totalorder %s74, %s77
      %p83 = scmp.eq.s32.totalorder %s38, 0
      %p84 = por %p82, %p83
      %p85 = scmp.ne.s32.totalorder %s74, %s77
      %p86 = scmp.eq.s32.totalorder %s43, 1
      %p87 = por %p85, %p86
      %p88 = scmp.ne.s32.totalorder %s77, %s78
      %p89 = scmp.eq.s32.totalorder %s43, 0
      %p90 = por %p88, %p89
      %p91 = scmp.ne.s32.totalorder %s77, %s78
      %p92 = scmp.eq.s32.totalorder %s44, 1
      %p93 = por %p91, %p92
      %p95 = scmp.ne.s32.totalorder %s78, %s94
      %p96 = scmp.eq.s32.totalorder %s44, 0
      %p97 = por %p95, %p96
      %s99 = sadd.s32 %s98, 1
      %p102 = scmp.eq.s32.totalorder %s38, 1
      %p103 = scmp.ne.s32.totalorder %s98, %s100
      %p104 = scmp.eq.s32.totalorder %s38, 0
      %p105 = por %p103, %p104
      %p106 = scmp.ne.s32.totalorder %s98, %s100
      %p107 = scmp.eq.s32.totalorder %s43, 1
      %p108 = por %p106, %p107
      %p109 = scmp.ne.s32.totalorder %s100, %s101
      %p110 = scmp.eq.s32.totalorder %s43, 0
      %p111 = por %p109, %p110
      %p112 = scmp.ne.s32.totalorder %s100, %s101
      %p113 = scmp.eq.s32.totalorder %s44, 1
      %p114 = por %p112, %p113
      %p116 = scmp.ne.s32.totalorder %s101, %s115
      %p117 = scmp.eq.s32.totalorder %s44, 0
      %p118 = por %p116, %p117
      %s120 = sadd.s32 %s119, 1
      %p123 = scmp.eq.s32.totalorder %s38, 1
      %p124 = scmp.ne.s32.totalorder %s119, %s121
      %p125 = scmp.eq.s32.totalorder %s38, 0
      %p126 = por %p124, %p125
      %p127 = scmp.ne.s32.totalorder %s119, %s121
      %p128 = scmp.eq.s32.totalorder %s43, 1
      %p129 = por %p127, %p128
      %p130 = scmp.ne.s32.totalorder %s121, %s122
      %p131 = scmp.eq.s32.totalorder %s43, 0
      %p132 = por %p130, %p131
      %p133 = scmp.ne.s32.totalorder %s121, %s122
      %p134 = scmp.eq.s32.totalorder %s44, 1
      %p135 = por %p133, %p134
      %p137 = scmp.ne.s32.totalorder %s122, %s136
      %p138 = scmp.eq.s32.totalorder %s44, 0
      %p139 = por %p137, %p138
      %s141 = sadd.s32 %s140, 1
      %p144 = scmp.eq.s32.totalorder %s38, 1
      %p145 = scmp.ne.s32.totalorder %s140, %s142
      %p146 = scmp.eq.s32.totalorder %s38, 0
      %p147 = por %p145, %p146
      %p148 = scmp.ne.s32.totalorder %s140, %s142
      %p149 = scmp.eq.s32.totalorder %s43, 1
      %p150 = por %p148, %p149
      %p151 = scmp.ne.s32.totalorder %s142, %s143
      %p152 = scmp.eq.s32.totalorder %s43, 0
      %p153 = por %p151, %p152
      %p154 = scmp.ne.s32.totalorder %s142, %s143
      %p155 = scmp.eq.s32.totalorder %s44, 1
      %p156 = por %p154, %p155
      %p158 = scmp.ne.s32.totalorder %s143, %s157
      %p159 = scmp.eq.s32.totalorder %s44, 0
      %p160 = por %p158, %p159
      %s162 = sadd.s32 %s161, 1
      %p165 = scmp.eq.s32.totalorder %s38, 1
      %p166 = scmp.ne.s32.totalorder %s161, %s163
      %p167 = scmp.eq.s32.totalorder %s38, 0
      %p168 = por %p166, %p167
      %p169 = scmp.ne.s32.totalorder %s161, %s163
      %p170 = scmp.eq.s32.totalorder %s43, 1
      %p171 = por %p169, %p170
      %p172 = scmp.ne.s32.totalorder %s163, %s164
      %p173 = scmp.eq.s32.totalorder %s43, 0
      %p174 = por %p172, %p173
      %p175 = scmp.ne.s32.totalorder %s163, %s164
      %p176 = scmp.eq.s32.totalorder %s44, 1
      %p177 = por %p175, %p176
      %p179 = scmp.ne.s32.totalorder %s164, %s178
      %p180 = scmp.eq.s32.totalorder %s44, 0
      %p181 = por %p179, %p180
      %s183 = sadd.s32 %s182, 1
      %p186 = scmp.eq.s32.totalorder %s38, 1
      %p187 = scmp.ne.s32.totalorder %s182, %s184
      %p188 = scmp.eq.s32.totalorder %s38, 0
      %p189 = por %p187, %p188
      %p190 = scmp.ne.s32.totalorder %s182, %s184
      %p191 = scmp.eq.s32.totalorder %s43, 1
      %p192 = por %p190, %p191
      %p193 = scmp.ne.s32.totalorder %s184, %s185
      %p194 = scmp.eq.s32.totalorder %s43, 0
      %p195 = por %p193, %p194
      %p196 = scmp.ne.s32.totalorder %s184, %s185
      %p197 = scmp.eq.s32.totalorder %s44, 1
      %p198 = por %p196, %p197
      %p200 = scmp.ne.s32.totalorder %s185, %s199
      %p201 = scmp.eq.s32.totalorder %s44, 0
      %p202 = por %p200, %p201
      %s204 = sadd.s32 %s203, 1
      %p207 = scmp.eq.s32.totalorder %s38, 1
      %p208 = scmp.ne.s32.totalorder %s203, %s205
      %p209 = scmp.eq.s32.totalorder %s38, 0
      %p210 = por %p208, %p209
      %p211 = scmp.ne.s32.totalorder %s203, %s205
      %p212 = scmp.eq.s32.totalorder %s43, 1
      %p213 = por %p211, %p212
      %p214 = scmp.ne.s32.totalorder %s205, %s206
      %p215 = scmp.eq.s32.totalorder %s43, 0
      %p216 = por %p214, %p215
      %p217 = scmp.ne.s32.totalorder %s205, %s206
      %p218 = scmp.eq.s32.totalorder %s44, 1
      %p219 = por %p217, %p218
      %p221 = scmp.ne.s32.totalorder %s206, %s220
      %p222 = scmp.eq.s32.totalorder %s44, 0
      %p223 = por %p221, %p222
      %s225 = sadd.s32 %s224, 1
      %p228 = scmp.eq.s32.totalorder %s38, 1
      %p229 = scmp.ne.s32.totalorder %s224, %s226
      %p230 = scmp.eq.s32.totalorder %s38, 0
      %p231 = por %p229, %p230
      %p232 = scmp.ne.s32.totalorder %s224, %s226
      %p233 = scmp.eq.s32.totalorder %s43, 1
      %p234 = por %p232, %p233
      %p235 = scmp.ne.s32.totalorder %s226, %s227
      %p236 = scmp.eq.s32.totalorder %s43, 0
      %p237 = por %p235, %p236
      %p238 = scmp.ne.s32.totalorder %s226, %s227
      %p239 = scmp.eq.s32.totalorder %s44, 1
      %p240 = por %p238, %p239
      %p242 = scmp.ne.s32.totalorder %s227, %s241
      %p243 = scmp.eq.s32.totalorder %s44, 0
      %p244 = por %p242, %p243
      %s246 = sadd.s32 %s245, 1
      %p249 = scmp.eq.s32.totalorder %s38, 1
      %p250 = scmp.ne.s32.totalorder %s245, %s247
      %p251 = scmp.eq.s32.totalorder %s38, 0
      %p252 = por %p250, %p251
      %p253 = scmp.ne.s32.totalorder %s245, %s247
      %p254 = scmp.eq.s32.totalorder %s43, 1
      %p255 = por %p253, %p254
      %p256 = scmp.ne.s32.totalorder %s247, %s248
      %p257 = scmp.eq.s32.totalorder %s43, 0
      %p258 = por %p256, %p257
      %p259 = scmp.ne.s32.totalorder %s247, %s248
      %p260 = scmp.eq.s32.totalorder %s44, 1
      %p261 = por %p259, %p260
      %p263 = scmp.ne.s32.totalorder %s248, %s262
      %p264 = scmp.eq.s32.totalorder %s44, 0
      %p265 = por %p263, %p264
      %s267 = sadd.s32 %s266, 1
      %p270 = scmp.eq.s32.totalorder %s38, 1
      %p271 = scmp.ne.s32.totalorder %s266, %s268
      %p272 = scmp.eq.s32.totalorder %s38, 0
      %p273 = por %p271, %p272
      %p274 = scmp.ne.s32.totalorder %s266, %s268
      %p275 = scmp.eq.s32.totalorder %s43, 1
      %p276 = por %p274, %p275
      %p277 = scmp.ne.s32.totalorder %s268, %s269
      %p278 = scmp.eq.s32.totalorder %s43, 0
      %p279 = por %p277, %p278
      %p280 = scmp.ne.s32.totalorder %s268, %s269
      %p281 = scmp.eq.s32.totalorder %s44, 1
      %p282 = por %p280, %p281
      %p284 = scmp.ne.s32.totalorder %s269, %s283
      %p285 = scmp.eq.s32.totalorder %s44, 0
      %p286 = por %p284, %p285
      %s288 = sadd.s32 %s287, 1
      %p291 = scmp.eq.s32.totalorder %s38, 1
      %p292 = scmp.ne.s32.totalorder %s287, %s289
      %p293 = scmp.eq.s32.totalorder %s38, 0
      %p294 = por %p292, %p293
      %p295 = scmp.ne.s32.totalorder %s287, %s289
      %p296 = scmp.eq.s32.totalorder %s43, 1
      %p297 = por %p295, %p296
      %p298 = scmp.ne.s32.totalorder %s289, %s290
      %p299 = scmp.eq.s32.totalorder %s43, 0
      %p300 = por %p298, %p299
      %p301 = scmp.ne.s32.totalorder %s289, %s290
      %p302 = scmp.eq.s32.totalorder %s44, 1
      %p303 = por %p301, %p302
      %p305 = scmp.ne.s32.totalorder %s290, %s304
      %p306 = scmp.eq.s32.totalorder %s44, 0
      %p307 = por %p305, %p306
      %s309 = sadd.s32 %s308, 1
      %p312 = scmp.eq.s32.totalorder %s38, 1
      %p313 = scmp.ne.s32.totalorder %s308, %s310
      %p314 = scmp.eq.s32.totalorder %s38, 0
      %p315 = por %p313, %p314
      %p316 = scmp.ne.s32.totalorder %s308, %s310
      %p317 = scmp.eq.s32.totalorder %s43, 1
      %p318 = por %p316, %p317
      %p319 = scmp.ne.s32.totalorder %s310, %s311
      %p320 = scmp.eq.s32.totalorder %s43, 0
      %p321 = por %p319, %p320
      %p322 = scmp.ne.s32.totalorder %s310, %s311
      %p323 = scmp.eq.s32.totalorder %s44, 1
      %p324 = por %p322, %p323
      %p326 = scmp.ne.s32.totalorder %s311, %s325
      %p327 = scmp.eq.s32.totalorder %s44, 0
      %p328 = por %p326, %p327
      %s330 = sadd.s32 %s329, 1
      %p333 = scmp.eq.s32.totalorder %s38, 1
      %p334 = scmp.ne.s32.totalorder %s329, %s331
      %p335 = scmp.eq.s32.totalorder %s38, 0
      %p336 = por %p334, %p335
      %p337 = scmp.ne.s32.totalorder %s329, %s331
      %p338 = scmp.eq.s32.totalorder %s43, 1
      %p339 = por %p337, %p338
      %p340 = scmp.ne.s32.totalorder %s331, %s332
      %p341 = scmp.eq.s32.totalorder %s43, 0
      %p342 = por %p340, %p341
      %p343 = scmp.ne.s32.totalorder %s331, %s332
      %p344 = scmp.eq.s32.totalorder %s44, 1
      %p345 = por %p343, %p344
      %p347 = scmp.ne.s32.totalorder %s332, %s346
      %p348 = scmp.eq.s32.totalorder %s44, 0
      %p349 = por %p347, %p348
      %s351 = sadd.s32 %s350, 1
      %p354 = scmp.eq.s32.totalorder %s38, 1
      %p355 = scmp.ne.s32.totalorder %s350, %s352
      %p356 = scmp.eq.s32.totalorder %s38, 0
      %p357 = por %p355, %p356
      %p358 = scmp.ne.s32.totalorder %s350, %s352
      %p359 = scmp.eq.s32.totalorder %s43, 1
      %p360 = por %p358, %p359
      %p361 = scmp.ne.s32.totalorder %s352, %s353
      %p362 = scmp.eq.s32.totalorder %s43, 0
      %p363 = por %p361, %p362
      %p364 = scmp.ne.s32.totalorder %s352, %s353
      %p365 = scmp.eq.s32.totalorder %s44, 1
      %p366 = por %p364, %p365
      %p368 = scmp.ne.s32.totalorder %s353, %s367
      %p369 = scmp.eq.s32.totalorder %s44, 0
      %p370 = por %p368, %p369
      %s372 = sadd.s32 %s371, 1
      %p375 = scmp.eq.s32.totalorder %s38, 1
      %p376 = scmp.ne.s32.totalorder %s371, %s373
      %p377 = scmp.eq.s32.totalorder %s38, 0
      %p378 = por %p376, %p377
      %p379 = scmp.ne.s32.totalorder %s371, %s373
      %p380 = scmp.eq.s32.totalorder %s43, 1
      %p381 = por %p379, %p380
      %p382 = scmp.ne.s32.totalorder %s373, %s374
      %p383 = scmp.eq.s32.totalorder %s43, 0
      %p384 = por %p382, %p383
      %p385 = scmp.ne.s32.totalorder %s373, %s374
      %p386 = scmp.eq.s32.totalorder %s44, 1
      %p387 = por %p385, %p386
      %p389 = scmp.ne.s32.totalorder %s374, %s388
      %p390 = scmp.eq.s32.totalorder %s44, 0
      %p391 = por %p389, %p390
      %s393 = sadd.s32 %s392, 1
      %p396 = scmp.eq.s32.totalorder %s38, 1
      %p397 = scmp.ne.s32.totalorder %s392, %s394
      %p398 = scmp.eq.s32.totalorder %s38, 0
      %p399 = por %p397, %p398
      %p400 = scmp.ne.s32.totalorder %s392, %s394
      %p401 = scmp.eq.s32.totalorder %s43, 1
      %p402 = por %p400, %p401
      %p403 = scmp.ne.s32.totalorder %s394, %s395
      %p404 = scmp.eq.s32.totalorder %s43, 0
      %p405 = por %p403, %p404
      %p406 = scmp.ne.s32.totalorder %s394, %s395
      %p407 = scmp.eq.s32.totalorder %s44, 1
      %p408 = por %p406, %p407
      %p410 = scmp.ne.s32.totalorder %s395, %s409
      %p411 = scmp.eq.s32.totalorder %s44, 0
      %p412 = por %p410, %p411
      %s414 = sadd.s32 %s413, 1
      %p417 = scmp.eq.s32.totalorder %s38, 1
      %p418 = scmp.ne.s32.totalorder %s413, %s415
      %p419 = scmp.eq.s32.totalorder %s38, 0
      %p420 = por %p418, %p419
      %p421 = scmp.ne.s32.totalorder %s413, %s415
      %p422 = scmp.eq.s32.totalorder %s43, 1
      %p423 = por %p421, %p422
      %p424 = scmp.ne.s32.totalorder %s415, %s416
      %p425 = scmp.eq.s32.totalorder %s43, 0
      %p426 = por %p424, %p425
      %p427 = scmp.ne.s32.totalorder %s415, %s416
      %p428 = scmp.eq.s32.totalorder %s44, 1
      %p429 = por %p427, %p428
      %p431 = scmp.ne.s32.totalorder %s416, %s430
      %p432 = scmp.eq.s32.totalorder %s44, 0
      %p433 = por %p431, %p432
      %s435 = sadd.s32 %s434, 1
      %p438 = scmp.eq.s32.totalorder %s38, 1
      %p439 = scmp.ne.s32.totalorder %s434, %s436
      %p440 = scmp.eq.s32.totalorder %s38, 0
      %p441 = por %p439, %p440
      %p442 = scmp.ne.s32.totalorder %s434, %s436
      %p443 = scmp.eq.s32.totalorder %s43, 1
      %p444 = por %p442, %p443
      %p445 = scmp.ne.s32.totalorder %s436, %s437
      %p446 = scmp.eq.s32.totalorder %s43, 0
      %p447 = por %p445, %p446
      %p448 = scmp.ne.s32.totalorder %s436, %s437
      %p449 = scmp.eq.s32.totalorder %s44, 1
      %p450 = por %p448, %p449
      %p452 = scmp.ne.s32.totalorder %s437, %s451
      %p453 = scmp.eq.s32.totalorder %s44, 0
      %p454 = por %p452, %p453
      %s456 = sadd.s32 %s455, 1
      %p459 = scmp.eq.s32.totalorder %s38, 1
      %p460 = scmp.ne.s32.totalorder %s455, %s457
      %p461 = scmp.eq.s32.totalorder %s38, 0
      %p462 = por %p460, %p461
      %p463 = scmp.ne.s32.totalorder %s455, %s457
      %p464 = scmp.eq.s32.totalorder %s43, 1
      %p465 = por %p463, %p464
      %p466 = scmp.ne.s32.totalorder %s457, %s458
      %p467 = scmp.eq.s32.totalorder %s43, 0
      %p468 = por %p466, %p467
      %p469 = scmp.ne.s32.totalorder %s457, %s458
      %p470 = scmp.eq.s32.totalorder %s44, 1
      %p471 = por %p469, %p470
      %p473 = scmp.ne.s32.totalorder %s458, %s472
      %p474 = scmp.eq.s32.totalorder %s44, 0
      %p475 = por %p473, %p474
      %s476 = ssub.s32 %s38, %s45
      %p477 = scmp.eq.s32.totalorder %s476, 0
      %s479 = sadd.s32 %s478, 1
      %s480 = scalar_select %p477, %s478, %s479
      %p483 = pneg %p477
      %p484 = scmp.eq.s32.totalorder %s38, 1
      %p485 = por %p483, %p484
      %p486 = scmp.ne.s32.totalorder %s478, %s481
      %p487 = scmp.eq.s32.totalorder %s38, 0
      %p488 = por %p486, %p487
      %p489 = scmp.ne.s32.totalorder %s478, %s481
      %p490 = scmp.eq.s32.totalorder %s43, 1
      %p491 = por %p489, %p490
      %p492 = scmp.ne.s32.totalorder %s481, %s482
      %p493 = scmp.eq.s32.totalorder %s43, 0
      %p494 = por %p492, %p493
      %p495 = scmp.ne.s32.totalorder %s481, %s482
      %p496 = scmp.eq.s32.totalorder %s44, 1
      %p497 = por %p495, %p496
      %p499 = scmp.ne.s32.totalorder %s482, %s498
      %p500 = scmp.eq.s32.totalorder %s44, 0
      %p501 = por %p499, %p500
      %p502 = scmp.le.s32.totalorder 1, %s38
      %p503 = scmp.lt.s32.totalorder %s38, 3
      %p504 = pnand %p502, %p503
      %p505 = pneg %p504
      // Predicated region
      $region9: #{tpu_custom_call.1} parent=5 // pred_check
        _
      $region10: #{tpu_custom_call.1} parent=5 // pred_check_branch
        %507 = sbr.rel (%p504) target = $region12
      $region11: #{tpu_custom_call.1} parent=5 // pred_region
        %s508 = ssub.s32 %s38, 1
        // Predicated region
        $region13: #{tpu_custom_call.1} parent=11 // pred_check
          %p509 = pneg %p111
        $region14: #{tpu_custom_call.1} parent=11 // pred_check_branch
          %511 = sbr.rel (%p509) target = $region16
        $region15: #{tpu_custom_call.1} parent=11 // pred_region
          _
        $region16: #{tpu_custom_call.1} parent=11 // pred_fallthru
          _
        // Predicated region
        $region17: #{tpu_custom_call.1} parent=11 // pred_check
          %p512 = pneg %p132
        $region18: #{tpu_custom_call.1} parent=11 // pred_check_branch
          %514 = sbr.rel (%p512) target = $region20
        $region19: #{tpu_custom_call.1} parent=11 // pred_region
          _
        $region20: #{tpu_custom_call.1} parent=11 // pred_fallthru
          _
        // Predicated region
        $region21: #{tpu_custom_call.1} parent=11 // pred_check
          %p515 = pneg %p153
        $region22: #{tpu_custom_call.1} parent=11 // pred_check_branch
          %517 = sbr.rel (%p515) target = $region24
        $region23: #{tpu_custom_call.1} parent=11 // pred_region
          _
        $region24: #{tpu_custom_call.1} parent=11 // pred_fallthru
          _
        // Predicated region
        $region25: #{tpu_custom_call.1} parent=11 // pred_check
          %p518 = pneg %p174
        $region26: #{tpu_custom_call.1} parent=11 // pred_check_branch
          %520 = sbr.rel (%p518) target = $region28
        $region27: #{tpu_custom_call.1} parent=11 // pred_region
          %s522 = ssub.s32 16, 16
          %523 = vsyncadd [#allocation6], %s522
          %s525 = sshll.u32 [#allocation7], 4
          %s526 = int_to_ptr.vmem [resolvable:$true] %s525
          %528 = dma.hbm_to_vmem [thread:$0]  %s5, 16, %s526, [#allocation6]
        $region28: #{tpu_custom_call.1} parent=11 // pred_fallthru
          _
        // Predicated region
        $region29: #{tpu_custom_call.1} parent=11 // pred_check
          %p529 = pneg %p195
        $region30: #{tpu_custom_call.1} parent=11 // pred_check_branch
          %531 = sbr.rel (%p529) target = $region32
        $region31: #{tpu_custom_call.1} parent=11 // pred_region
          _
        $region32: #{tpu_custom_call.1} parent=11 // pred_fallthru
          _
        // Predicated region
        $region33: #{tpu_custom_call.1} parent=11 // pred_check
          %p532 = pneg %p216
        $region34: #{tpu_custom_call.1} parent=11 // pred_check_branch
          %534 = sbr.rel (%p532) target = $region36
        $region35: #{tpu_custom_call.1} parent=11 // pred_region
          %s536 = ssub.s32 16, 16
          %537 = vsyncadd [#allocation9], %s536
          %s539 = sshll.u32 [#allocation8], 4
          %s540 = int_to_ptr.vmem [resolvable:$true] %s539
          %542 = dma.hbm_to_vmem [thread:$0]  %s7, 16, %s540, [#allocation9]
        $region36: #{tpu_custom_call.1} parent=11 // pred_fallthru
          _
        // Predicated region
        $region37: #{tpu_custom_call.1} parent=11 // pred_check
          %p543 = pneg %p237
        $region38: #{tpu_custom_call.1} parent=11 // pred_check_branch
          %545 = sbr.rel (%p543) target = $region40
        $region39: #{tpu_custom_call.1} parent=11 // pred_region
          %s547 = ssub.s32 256, 256
          %548 = vsyncadd [#allocation9], %s547
          %s549 = sshll.u32 [#allocation10], 4
          %s550 = int_to_ptr.vmem [resolvable:$true] %s549
          %555 = dma.hbm_to_vmem [thread:$0]  %s8, 256, %s550, [#allocation9], 64, 64, 4
        $region40: #{tpu_custom_call.1} parent=11 // pred_fallthru
          _
        // Predicated region
        $region41: #{tpu_custom_call.1} parent=11 // pred_check
          %p556 = pneg %p258
        $region42: #{tpu_custom_call.1} parent=11 // pred_check_branch
          %558 = sbr.rel (%p556) target = $region44
        $region43: #{tpu_custom_call.1} parent=11 // pred_region
          %s560 = ssub.s32 16, 16
          %561 = vsyncadd [#allocation12], %s560
          %s563 = sshll.u32 [#allocation11], 4
          %s564 = int_to_ptr.vmem [resolvable:$true] %s563
          %566 = dma.hbm_to_vmem [thread:$0]  %s9, 16, %s564, [#allocation12]
        $region44: #{tpu_custom_call.1} parent=11 // pred_fallthru
          _
        // Predicated region
        $region45: #{tpu_custom_call.1} parent=11 // pred_check
          %p567 = pneg %p279
        $region46: #{tpu_custom_call.1} parent=11 // pred_check_branch
          %569 = sbr.rel (%p567) target = $region48
        $region47: #{tpu_custom_call.1} parent=11 // pred_region
          _
        $region48: #{tpu_custom_call.1} parent=11 // pred_fallthru
          _
        // Predicated region
        $region49: #{tpu_custom_call.1} parent=11 // pred_check
          %p570 = pneg %p300
        $region50: #{tpu_custom_call.1} parent=11 // pred_check_branch
          %572 = sbr.rel (%p570) target = $region52
        $region51: #{tpu_custom_call.1} parent=11 // pred_region
          %s574 = ssub.s32 16, 16
          %575 = vsyncadd [#allocation12], %s574
          %s577 = sshll.u32 [#allocation13], 4
          %s578 = int_to_ptr.vmem [resolvable:$true] %s577
          %580 = dma.hbm_to_vmem [thread:$0]  %s11, 16, %s578, [#allocation12]
        $region52: #{tpu_custom_call.1} parent=11 // pred_fallthru
          _
        // Predicated region
        $region53: #{tpu_custom_call.1} parent=11 // pred_check
          %p581 = pneg %p321
        $region54: #{tpu_custom_call.1} parent=11 // pred_check_branch
          %583 = sbr.rel (%p581) target = $region56
        $region55: #{tpu_custom_call.1} parent=11 // pred_region
          _
        $region56: #{tpu_custom_call.1} parent=11 // pred_fallthru
          _
        // Predicated region
        $region57: #{tpu_custom_call.1} parent=11 // pred_check
          %p584 = pneg %p342
        $region58: #{tpu_custom_call.1} parent=11 // pred_check_branch
          %586 = sbr.rel (%p584) target = $region60
        $region59: #{tpu_custom_call.1} parent=11 // pred_region
          %s588 = ssub.s32 16, 16
          %589 = vsyncadd [#allocation15], %s588
          %s591 = sshll.u32 [#allocation14], 4
          %s592 = int_to_ptr.vmem [resolvable:$true] %s591
          %594 = dma.hbm_to_vmem [thread:$0]  %s13, 16, %s592, [#allocation15]
        $region60: #{tpu_custom_call.1} parent=11 // pred_fallthru
          _
        // Predicated region
        $region61: #{tpu_custom_call.1} parent=11 // pred_check
          %p595 = pneg %p363
        $region62: #{tpu_custom_call.1} parent=11 // pred_check_branch
          %597 = sbr.rel (%p595) target = $region64
        $region63: #{tpu_custom_call.1} parent=11 // pred_region
          _
        $region64: #{tpu_custom_call.1} parent=11 // pred_fallthru
          _
        // Predicated region
        $region65: #{tpu_custom_call.1} parent=11 // pred_check
          %p598 = pneg %p384
        $region66: #{tpu_custom_call.1} parent=11 // pred_check_branch
          %600 = sbr.rel (%p598) target = $region68
        $region67: #{tpu_custom_call.1} parent=11 // pred_region
          _
        $region68: #{tpu_custom_call.1} parent=11 // pred_fallthru
          _
        // Predicated region
        $region69: #{tpu_custom_call.1} parent=11 // pred_check
          %p601 = pneg %p405
        $region70: #{tpu_custom_call.1} parent=11 // pred_check_branch
          %603 = sbr.rel (%p601) target = $region72
        $region71: #{tpu_custom_call.1} parent=11 // pred_region
          _
        $region72: #{tpu_custom_call.1} parent=11 // pred_fallthru
          _
        // Predicated region
        $region73: #{tpu_custom_call.1} parent=11 // pred_check
          %p604 = pneg %p426
        $region74: #{tpu_custom_call.1} parent=11 // pred_check_branch
          %606 = sbr.rel (%p604) target = $region76
        $region75: #{tpu_custom_call.1} parent=11 // pred_region
          _
        $region76: #{tpu_custom_call.1} parent=11 // pred_fallthru
          _
        // Predicated region
        $region77: #{tpu_custom_call.1} parent=11 // pred_check
          %p607 = pneg %p447
        $region78: #{tpu_custom_call.1} parent=11 // pred_check_branch
          %609 = sbr.rel (%p607) target = $region80
        $region79: #{tpu_custom_call.1} parent=11 // pred_region
          _
        $region80: #{tpu_custom_call.1} parent=11 // pred_fallthru
          _
        // Predicated region
        $region81: #{tpu_custom_call.1} parent=11 // pred_check
          %p610 = pneg %p468
        $region82: #{tpu_custom_call.1} parent=11 // pred_check_branch
          %612 = sbr.rel (%p610) target = $region84
        $region83: #{tpu_custom_call.1} parent=11 // pred_region
          _
        $region84: #{tpu_custom_call.1} parent=11 // pred_fallthru
          _
      $region12: #{tpu_custom_call.1} parent=5 // pred_fallthru
        _
      %p613 = scmp.lt.s32.totalorder %s38, 2
      // Predicated region
      $region85: #{tpu_custom_call.1} parent=5 // pred_check
        %p614 = pneg %p613
      $region86: #{tpu_custom_call.1} parent=5 // pred_check_branch
        %616 = sbr.rel (%p614) target = $region88
      $region87: #{tpu_custom_call.1} parent=5 // pred_region
        // Predicated region
        $region89: #{tpu_custom_call.1} parent=87 // pred_check
          %p617 = pneg %p58
        $region90: #{tpu_custom_call.1} parent=87 // pred_check_branch
          %619 = sbr.rel (%p617) target = $region92
        $region91: #{tpu_custom_call.1} parent=87 // pred_region
          %s620 = sand.u32 %s48, 1
          %s621 = scalar_lea.sflag [#allocation3], %s620
          %s622 = sand.u32 %s48, 1
          %s623 = smul.addr %s622, 4
          %s624 = scalar_lea.vmem [#allocation2], %s623
          %s626 = ssub.s32 64, 64
          %627 = vsyncadd %s621, %s626
          %s628 = smul.addr %s38, 64
          %s629 = scalar_lea.hbm %s0, %s628
          %s631 = sshll.u32 %s624, 4
          %s632 = int_to_ptr.vmem [resolvable:$true] %s631
          %634 = dma.hbm_to_vmem [thread:$0]  %s629, 64, %s632, %s621
        $region92: #{tpu_custom_call.1} parent=87 // pred_fallthru
          _
        // Predicated region
        $region93: #{tpu_custom_call.1} parent=87 // pred_check
          %p635 = pneg %p84
        $region94: #{tpu_custom_call.1} parent=87 // pred_check_branch
          %637 = sbr.rel (%p635) target = $region96
        $region95: #{tpu_custom_call.1} parent=87 // pred_region
          %s638 = sand.u32 %s38, 1
          %s639 = scalar_lea.sflag [#allocation6], %s638
          %s640 = sand.u32 %s74, 1
          %s641 = scalar_lea.vmem [#allocation5], %s640
          %s643 = ssub.s32 16, 16
          %644 = vsyncadd %s639, %s643
          %s645 = smul.addr %s38, 16
          %s646 = scalar_lea.hbm %s1, %s645
          %s648 = sshll.u32 %s641, 4
          %s649 = int_to_ptr.vmem [resolvable:$true] %s648
          %651 = dma.hbm_to_vmem [thread:$0]  %s646, 16, %s649, %s639
        $region96: #{tpu_custom_call.1} parent=87 // pred_fallthru
          _
      $region88: #{tpu_custom_call.1} parent=5 // pred_fallthru
        _
      %p652 = scmp.le.s32.totalorder 1, %s38
      %p653 = scmp.lt.s32.totalorder %s38, 3
      %p654 = pnand %p652, %p653
      %p655 = pneg %p654
      // Predicated region
      $region97: #{tpu_custom_call.1} parent=5 // pred_check
        _
      $region98: #{tpu_custom_call.1} parent=5 // pred_check_branch
        %657 = sbr.rel (%p654) target = $region100
      $region99: #{tpu_custom_call.1} parent=5 // pred_region
        %s658 = ssub.s32 %s38, 1
        %s659 = sand.u32 %s51, 1
        %s660 = scalar_lea.sflag [#allocation3], %s659
        %s661 = sand.u32 %s51, 1
        %s662 = smul.addr %s661, 4
        %s663 = scalar_lea.vmem [#allocation2], %s662
        // Predicated region
        $region101: #{tpu_custom_call.1} parent=99 // pred_check
          %p664 = pneg %p64
        $region102: #{tpu_custom_call.1} parent=99 // pred_check_branch
          %666 = sbr.rel (%p664) target = $region104
        $region103: #{tpu_custom_call.1} parent=99 // pred_region
          %667 = dma.done %s660, 64
        $region104: #{tpu_custom_call.1} parent=99 // pred_fallthru
          _
        %s668 = sand.u32 %s43, 1
        %s669 = scalar_lea.sflag [#allocation6], %s668
        %s670 = sand.u32 %s77, 1
        %s671 = scalar_lea.vmem [#allocation5], %s670
        // Predicated region
        $region105: #{tpu_custom_call.1} parent=99 // pred_check
          %p672 = pneg %p90
        $region106: #{tpu_custom_call.1} parent=99 // pred_check_branch
          %674 = sbr.rel (%p672) target = $region108
        $region107: #{tpu_custom_call.1} parent=99 // pred_region
          %675 = dma.done %s669, 16
        $region108: #{tpu_custom_call.1} parent=99 // pred_fallthru
          _
        // Predicated region
        $region109: #{tpu_custom_call.1} parent=99 // pred_check
          %p676 = pneg %p174
        $region110: #{tpu_custom_call.1} parent=99 // pred_check_branch
          %678 = sbr.rel (%p676) target = $region112
        $region111: #{tpu_custom_call.1} parent=99 // pred_region
          %679 = dma.done [#allocation6], 16
        $region112: #{tpu_custom_call.1} parent=99 // pred_fallthru
          _
        // Predicated region
        $region113: #{tpu_custom_call.1} parent=99 // pred_check
          %p680 = pneg %p216
        $region114: #{tpu_custom_call.1} parent=99 // pred_check_branch
          %682 = sbr.rel (%p680) target = $region116
        $region115: #{tpu_custom_call.1} parent=99 // pred_region
          %683 = dma.done [#allocation9], 16
        $region116: #{tpu_custom_call.1} parent=99 // pred_fallthru
          _
        // Predicated region
        $region117: #{tpu_custom_call.1} parent=99 // pred_check
          %p684 = pneg %p237
        $region118: #{tpu_custom_call.1} parent=99 // pred_check_branch
          %686 = sbr.rel (%p684) target = $region120
        $region119: #{tpu_custom_call.1} parent=99 // pred_region
          %687 = dma.done [#allocation9], 256
        $region120: #{tpu_custom_call.1} parent=99 // pred_fallthru
          _
        // Predicated region
        $region121: #{tpu_custom_call.1} parent=99 // pred_check
          %p688 = pneg %p258
        $region122: #{tpu_custom_call.1} parent=99 // pred_check_branch
          %690 = sbr.rel (%p688) target = $region124
        $region123: #{tpu_custom_call.1} parent=99 // pred_region
          %691 = dma.done [#allocation12], 16
        $region124: #{tpu_custom_call.1} parent=99 // pred_fallthru
          _
        // Predicated region
        $region125: #{tpu_custom_call.1} parent=99 // pred_check
          %p692 = pneg %p300
        $region126: #{tpu_custom_call.1} parent=99 // pred_check_branch
          %694 = sbr.rel (%p692) target = $region128
        $region127: #{tpu_custom_call.1} parent=99 // pred_region
          %695 = dma.done [#allocation12], 16
        $region128: #{tpu_custom_call.1} parent=99 // pred_fallthru
          _
        // Predicated region
        $region129: #{tpu_custom_call.1} parent=99 // pred_check
          %p696 = pneg %p342
        $region130: #{tpu_custom_call.1} parent=99 // pred_check_branch
          %698 = sbr.rel (%p696) target = $region132
        $region131: #{tpu_custom_call.1} parent=99 // pred_region
          %699 = dma.done [#allocation15], 16
        $region132: #{tpu_custom_call.1} parent=99 // pred_fallthru
          _
        %s700 = sand.u32 %s51, 1
        %s701 = scalar_lea.sflag [#allocation3], %s700
        %s702 = sand.u32 %s51, 1
        %s703 = smul.addr %s702, 4
        %s704 = scalar_lea.vmem [#allocation2], %s703
        %p705 = pneg %p64
        %p706 = pneg %p61
        %s707 = sand.u32 %s43, 1
        %s708 = scalar_lea.sflag [#allocation6], %s707
        %s709 = sand.u32 %s77, 1
        %s710 = scalar_lea.vmem [#allocation5], %s709
        %p711 = pneg %p90
        %p712 = pneg %p87
        %p713 = pneg %p111
        %p714 = pneg %p108
        %p715 = pneg %p132
        %p716 = pneg %p129
        %p717 = pneg %p153
        %p718 = pneg %p150
        %p719 = pneg %p174
        %p720 = pneg %p171
        %p721 = pneg %p195
        %p722 = pneg %p192
        %p723 = pneg %p216
        %p724 = pneg %p213
        %p725 = pneg %p237
        %p726 = pneg %p234
        %p727 = pneg %p258
        %p728 = pneg %p255
        %p729 = pneg %p279
        %p730 = pneg %p276
        %p731 = pneg %p300
        %p732 = pneg %p297
        %p733 = pneg %p321
        %p734 = pneg %p318
        %p735 = pneg %p342
        %p736 = pneg %p339
        %p737 = pneg %p363
        %p738 = pneg %p360
        %p739 = pneg %p384
        %p740 = pneg %p381
        %p741 = pneg %p405
        %p742 = pneg %p402
        %p743 = pneg %p426
        %p744 = pneg %p423
        %p745 = pneg %p447
        %p746 = pneg %p444
        %p747 = pneg %p468
        %p748 = pneg %p465
        %p749 = pneg %p494
        %p750 = pneg %p491
        %s751 = sand.u32 %s481, 1
        %s752 = scalar_lea.sflag [#allocation4], %s751
        %s753 = sand.u32 %s481, 1
        %s754 = scalar_lea.vmem [#allocation16], %s753
        %v756 = vld [vmem:[%s663] sm:$0xf]
        %v757 = vld [vmem:[%s4] sm:$0xf]
        %v758 = vld [vmem:[%s4 + $0x4] sm:$0xf]
        %v759 = vld [vmem:[%s4 + $0x8] sm:$0xf]
        %v760 = vld [vmem:[%s4 + $0xc] sm:$0xf]
        %v761 = vld [vmem:[#allocation7] sm:$0x1]
        %v763 = vlaneseq
        %v764 = vshrl.u32 %v763, 7
        %v765 = vsub.s32 0, %v764
        %v766 = vrot.slane %v761, %v765
        %v772 = vunpack.c.l.b16 %v757
        %v773 = vunpack.c.l.b16 %v758
        %v774 = vunpack.c.l.b16 %v759
        %v775 = vunpack.c.l.b16 %v760
        %v776 = vpack.c.b16 %v773, %v772
        %v777 = vpack.c.b16 %v775, %v774
        %vm780 = vcmask 261120
        %v782 = vsel %vm780, %v756, 0
        %784 = vmatprep.subr.bf16.mxu0 0
        %785 = vmatpush1.bf16.msra.mxu0 %v776
        %786 = vmatprep.subr.bf16.mxu0 0
        %787 = vmatpush1.bf16.msra.mxu0 %v777
        %788 = vmatprep.subr.bf16.mxu0 0
        %789 = vmatpush1.bf16.msra.mxu0 0
        %790 = vmatprep.subr.bf16.mxu0 0
        %791 = vmatpush1.bf16.msra.mxu0 0
        %792 = vmatprep.subr.bf16.mxu0 0
        %793 = vmatpush1.bf16.msra.mxu0 0
        %794 = vmatprep.subr.bf16.mxu0 0
        %795 = vmatpush1.bf16.msra.mxu0 0
        %796 = vmatprep.subr.bf16.mxu0 0
        %797 = vmatpush1.bf16.msra.mxu0 0
        %798 = vmatprep.subr.bf16.mxu0 0
        %799 = vmatpush1.bf16.msra.mxu0 0
        %800 = vmatprep.subr.bf16.mxu0 0
        %801 = vmatpush1.bf16.msra.mxu0 0
        %802 = vmatprep.subr.bf16.mxu0 0
        %803 = vmatpush1.bf16.msra.mxu0 0
        %804 = vmatprep.subr.bf16.mxu0 0
        %805 = vmatpush1.bf16.msra.mxu0 0
        %806 = vmatprep.subr.bf16.mxu0 0
        %807 = vmatpush1.bf16.msra.mxu0 0
        %808 = vmatprep.subr.bf16.mxu0 0
        %809 = vmatpush1.bf16.msra.mxu0 0
        %810 = vmatprep.subr.bf16.mxu0 0
        %811 = vmatpush1.bf16.msra.mxu0 0
        %812 = vmatprep.subr.bf16.mxu0 0
        %813 = vmatpush1.bf16.msra.mxu0 0
        %814 = vmatprep.subr.bf16.mxu0 0
        %815 = vmatpush1.bf16.msra.mxu0 0
        %816 = vmatprep.mubr.bf16.mxu0 0
        %817 = vmatmul.mubr.bf16.gmra.mrb[0].mxu0 %v782
        %v818 = vpop.f32.mrb[0].mxu0
        %v819 = vadd.f32 %v766, %v818
        %v820 = vpop.f32.mrb[0].mxu0
        %v821 = vpop.f32.mrb[0].mxu0
        %v822 = vpop.f32.mrb[0].mxu0
        %823 = vdwg.mxu0
        %v824 = vpack.c.bf16 %v819, %v819
        %v825 = vld [vmem:[%s6] sm:$0xf]
        %v826 = vld [vmem:[%s6 + $0x4] sm:$0xf]
        %v827 = vld [vmem:[%s6 + $0x8] sm:$0xf]
        %v828 = vld [vmem:[%s6 + $0xc] sm:$0xf]
        %v829 = vld [vmem:[#allocation8] sm:$0x1]
        %v831 = vlaneseq
        %v832 = vshrl.u32 %v831, 7
        %v833 = vsub.s32 0, %v832
        %v834 = vrot.slane %v829, %v833
        %v840 = vunpack.c.l.b16 %v825
        %v841 = vunpack.c.l.b16 %v826
        %v842 = vunpack.c.l.b16 %v827
        %v843 = vunpack.c.l.b16 %v828
        %v844 = vpack.c.b16 %v841, %v840
        %v845 = vpack.c.b16 %v843, %v842
        %848 = vmatprep.subr.bf16.mxu0 0
        %849 = vmatpush1.bf16.msra.mxu0 %v844
        %850 = vmatprep.subr.bf16.mxu0 0
        %851 = vmatpush1.bf16.msra.mxu0 %v845
        %852 = vmatprep.subr.bf16.mxu0 0
        %853 = vmatpush1.bf16.msra.mxu0 0
        %854 = vmatprep.subr.bf16.mxu0 0
        %855 = vmatpush1.bf16.msra.mxu0 0
        %856 = vmatprep.subr.bf16.mxu0 0
        %857 = vmatpush1.bf16.msra.mxu0 0
        %858 = vmatprep.subr.bf16.mxu0 0
        %859 = vmatpush1.bf16.msra.mxu0 0
        %860 = vmatprep.subr.bf16.mxu0 0
        %861 = vmatpush1.bf16.msra.mxu0 0
        %862 = vmatprep.subr.bf16.mxu0 0
        %863 = vmatpush1.bf16.msra.mxu0 0
        %864 = vmatprep.subr.bf16.mxu0 0
        %865 = vmatpush1.bf16.msra.mxu0 0
        %866 = vmatprep.subr.bf16.mxu0 0
        %867 = vmatpush1.bf16.msra.mxu0 0
        %868 = vmatprep.subr.bf16.mxu0 0
        %869 = vmatpush1.bf16.msra.mxu0 0
        %870 = vmatprep.subr.bf16.mxu0 0
        %871 = vmatpush1.bf16.msra.mxu0 0
        %872 = vmatprep.subr.bf16.mxu0 0
        %873 = vmatpush1.bf16.msra.mxu0 0
        %874 = vmatprep.subr.bf16.mxu0 0
        %875 = vmatpush1.bf16.msra.mxu0 0
        %876 = vmatprep.subr.bf16.mxu0 0
        %877 = vmatpush1.bf16.msra.mxu0 0
        %878 = vmatprep.subr.bf16.mxu0 0
        %879 = vmatpush1.bf16.msra.mxu0 0
        %880 = vmatprep.mubr.bf16.mxu0 0
        %881 = vmatmul.mubr.bf16.gmra.mrb[0].mxu0 %v782
        %v882 = vpop.f32.mrb[0].mxu0
        %v883 = vadd.f32 %v834, %v882
        %v884 = vpop.f32.mrb[0].mxu0
        %v885 = vpop.f32.mrb[0].mxu0
        %v886 = vpop.f32.mrb[0].mxu0
        %887 = vdwg.mxu0
        %v888 = vpack.c.bf16 %v883, %v883
        %v889 = vld [vmem:[%s663] sm:$0x1]
        %v890 = vld [vmem:[%s2] sm:$0xf]
        %v891 = vld [vmem:[%s2 + $0x4] sm:$0xf]
        %v892 = vld [vmem:[%s2 + $0x8] sm:$0xf]
        %v893 = vld [vmem:[%s2 + $0xc] sm:$0xf]
        %v894 = vld [vmem:[%s3] sm:$0x1]
        %v899 = vunpack.c.l.b16 %v890
        %v900 = vunpack.c.l.b16 %v891
        %v901 = vunpack.c.l.b16 %v892
        %v902 = vunpack.c.l.b16 %v893
        %v903 = vpack.c.b16 %v900, %v899
        %v904 = vpack.c.b16 %v902, %v901
        %v908 = vsel %vm780, %v889, 0
        %910 = vmatprep.subr.bf16.mxu0 0
        %911 = vmatpush1.bf16.msra.mxu0 %v903
        %912 = vmatprep.subr.bf16.mxu0 0
        %913 = vmatpush1.bf16.msra.mxu0 %v904
        %914 = vmatprep.subr.bf16.mxu0 0
        %915 = vmatpush1.bf16.msra.mxu0 0
        %916 = vmatprep.subr.bf16.mxu0 0
        %917 = vmatpush1.bf16.msra.mxu0 0
        %918 = vmatprep.subr.bf16.mxu0 0
        %919 = vmatpush1.bf16.msra.mxu0 0
        %920 = vmatprep.subr.bf16.mxu0 0
        %921 = vmatpush1.bf16.msra.mxu0 0
        %922 = vmatprep.subr.bf16.mxu0 0
        %923 = vmatpush1.bf16.msra.mxu0 0
        %924 = vmatprep.subr.bf16.mxu0 0
        %925 = vmatpush1.bf16.msra.mxu0 0
        %926 = vmatprep.subr.bf16.mxu0 0
        %927 = vmatpush1.bf16.msra.mxu0 0
        %928 = vmatprep.subr.bf16.mxu0 0
        %929 = vmatpush1.bf16.msra.mxu0 0
        %930 = vmatprep.subr.bf16.mxu0 0
        %931 = vmatpush1.bf16.msra.mxu0 0
        %932 = vmatprep.subr.bf16.mxu0 0
        %933 = vmatpush1.bf16.msra.mxu0 0
        %934 = vmatprep.subr.bf16.mxu0 0
        %935 = vmatpush1.bf16.msra.mxu0 0
        %936 = vmatprep.subr.bf16.mxu0 0
        %937 = vmatpush1.bf16.msra.mxu0 0
        %938 = vmatprep.subr.bf16.mxu0 0
        %939 = vmatpush1.bf16.msra.mxu0 0
        %940 = vmatprep.subr.bf16.mxu0 0
        %941 = vmatpush1.bf16.msra.mxu0 0
        %942 = vmatprep.mubr.bf16.mxu0 0
        %943 = vmatmul.mubr.bf16.gmra.mrb[0].mxu0 %v908
        %v944 = vpop.f32.mrb[0].mxu0
        %v945 = vadd.f32 %v894, %v944
        %v946 = vpop.f32.mrb[0].mxu0
        %v947 = vpop.f32.mrb[0].mxu0
        %v948 = vpop.f32.mrb[0].mxu0
        %949 = vdwg.mxu0
        %v950 = vpack.c.bf16 %v945, %v945
        %v951 = vld [vmem:[%s671] sm:$0x1]
        %v953 = vsel %vm780, %v950, 0
        %v956 = vsel %vm780, %v824, 0
        %958 = vmatprep.subr.bf16.mxu0 0
        %959 = vmatpush1.bf16.xpose.msra.mxu0 %v956
        %960 = vmatprep.subr.bf16.mxu0 0
        %961 = vmatpush1.bf16.xpose.msra.mxu0 0
        %962 = vmatprep.subr.bf16.mxu0 0
        %963 = vmatpush1.bf16.xpose.msra.mxu0 0
        %964 = vmatprep.subr.bf16.mxu0 0
        %965 = vmatpush1.bf16.xpose.msra.mxu0 0
        %966 = vmatprep.subr.bf16.mxu0 0
        %967 = vmatpush1.bf16.xpose.msra.mxu0 0
        %968 = vmatprep.subr.bf16.mxu0 0
        %969 = vmatpush1.bf16.xpose.msra.mxu0 0
        %970 = vmatprep.subr.bf16.mxu0 0
        %971 = vmatpush1.bf16.xpose.msra.mxu0 0
        %972 = vmatprep.subr.bf16.mxu0 0
        %973 = vmatpush1.bf16.xpose.msra.mxu0 0
        %974 = vmatprep.subr.bf16.mxu0 0
        %975 = vmatpush1.bf16.xpose.msra.mxu0 0
        %976 = vmatprep.subr.bf16.mxu0 0
        %977 = vmatpush1.bf16.xpose.msra.mxu0 0
        %978 = vmatprep.subr.bf16.mxu0 0
        %979 = vmatpush1.bf16.xpose.msra.mxu0 0
        %980 = vmatprep.subr.bf16.mxu0 0
        %981 = vmatpush1.bf16.xpose.msra.mxu0 0
        %982 = vmatprep.subr.bf16.mxu0 0
        %983 = vmatpush1.bf16.xpose.msra.mxu0 0
        %984 = vmatprep.subr.bf16.mxu0 0
        %985 = vmatpush1.bf16.xpose.msra.mxu0 0
        %986 = vmatprep.subr.bf16.mxu0 0
        %987 = vmatpush1.bf16.xpose.msra.mxu0 0
        %988 = vmatprep.subr.bf16.mxu0 0
        %989 = vmatpush1.bf16.xpose.msra.mxu0 0
        %990 = vmatprep.mubr.bf16.mxu0 0
        %991 = vmatmul.mubr.bf16.gmra.mrb[0].mxu0 %v953
        %v992 = vpop.f32.mrb[0].mxu0
        %v993 = vadd.f32 %v951, %v992
        %v994 = vpop.f32.mrb[0].mxu0
        %v995 = vpop.f32.mrb[0].mxu0
        %v996 = vpop.f32.mrb[0].mxu0
        %997 = vdwg.mxu0
        %vm998 = vcmask 57344
        %v999 = vsel %vm998, %v993, -inf
        %1000 = vmax.xlane.f32.xlu0 %v999
        %v1001 = vpop.xlane.xlu0 %1000
        %v1002 = vsub.f32 %v993, %v1001
        %v1003 = vmul.f32 %v1002, 1.442695
        %v1004 = vpow.pop %v1003
        %v1005 = vsel %vm998, %v1004, 0.0
        %1006 = vadd.xlane.f32.xlu0 %v1005
        %v1007 = vpop.xlane.xlu0 %1006
        %v1008 = vrcp.pop %v1007
        %v1009 = vmul.f32 %v1004, %v1008
        %v1010 = vpack.c.bf16 %v1009, %v1009
        %vm1011 = vcmask 64512
        %v1013 = vsel %vm1011, %v1010, 0
        %vm1015 = vcmask 1043456
        %v1017 = vsel %vm1015, %v888, 0
        %1019 = vmatprep.subr.bf16.mxu0 0
        %1020 = vmatpush1.bf16.msra.mxu0 %v1017
        %1021 = vmatprep.subr.bf16.mxu0 0
        %1022 = vmatpush1.bf16.msra.mxu0 0
        %1023 = vmatprep.subr.bf16.mxu0 0
        %1024 = vmatpush1.bf16.msra.mxu0 0
        %1025 = vmatprep.subr.bf16.mxu0 0
        %1026 = vmatpush1.bf16.msra.mxu0 0
        %1027 = vmatprep.subr.bf16.mxu0 0
        %1028 = vmatpush1.bf16.msra.mxu0 0
        %1029 = vmatprep.subr.bf16.mxu0 0
        %1030 = vmatpush1.bf16.msra.mxu0 0
        %1031 = vmatprep.subr.bf16.mxu0 0
        %1032 = vmatpush1.bf16.msra.mxu0 0
        %1033 = vmatprep.subr.bf16.mxu0 0
        %1034 = vmatpush1.bf16.msra.mxu0 0
        %1035 = vmatprep.subr.bf16.mxu0 0
        %1036 = vmatpush1.bf16.msra.mxu0 0
        %1037 = vmatprep.subr.bf16.mxu0 0
        %1038 = vmatpush1.bf16.msra.mxu0 0
        %1039 = vmatprep.subr.bf16.mxu0 0
        %1040 = vmatpush1.bf16.msra.mxu0 0
        %1041 = vmatprep.subr.bf16.mxu0 0
        %1042 = vmatpush1.bf16.msra.mxu0 0
        %1043 = vmatprep.subr.bf16.mxu0 0
        %1044 = vmatpush1.bf16.msra.mxu0 0
        %1045 = vmatprep.subr.bf16.mxu0 0
        %1046 = vmatpush1.bf16.msra.mxu0 0
        %1047 = vmatprep.subr.bf16.mxu0 0
        %1048 = vmatpush1.bf16.msra.mxu0 0
        %1049 = vmatprep.subr.bf16.mxu0 0
        %1050 = vmatpush1.bf16.msra.mxu0 0
        %1051 = vmatprep.mubr.bf16.mxu0 0
        %1052 = vmatmul.mubr.bf16.gmra.mrb[0].mxu0 %v1013
        %v1053 = vpop.f32.mrb[0].mxu0
        %v1054 = vadd.f32 0.0, %v1053
        %v1055 = vpop.f32.mrb[0].mxu0
        %v1056 = vpop.f32.mrb[0].mxu0
        %v1057 = vpop.f32.mrb[0].mxu0
        %1058 = vdwg.mxu0
        %v1059 = vpack.c.bf16 %v1054, %v1054
        %v1060 = vld [vmem:[#allocation10] sm:$0xf]
        %v1061 = vld [vmem:[#allocation10 + $0x4] sm:$0xf]
        %v1062 = vld [vmem:[#allocation10 + $0x8] sm:$0xf]
        %v1063 = vld [vmem:[#allocation10 + $0xc] sm:$0xf]
        %v1064 = vld [vmem:[#allocation11] sm:$0x1]
        %v1069 = vunpack.c.l.b16 %v1060
        %v1070 = vunpack.c.l.b16 %v1061
        %v1071 = vunpack.c.l.b16 %v1062
        %v1072 = vunpack.c.l.b16 %v1063
        %v1073 = vpack.c.b16 %v1070, %v1069
        %v1074 = vpack.c.b16 %v1072, %v1071
        %v1078 = vsel %vm780, %v1059, 0
        %1080 = vmatprep.subr.bf16.mxu0 0
        %1081 = vmatpush1.bf16.msra.mxu0 %v1073
        %1082 = vmatprep.subr.bf16.mxu0 0
        %1083 = vmatpush1.bf16.msra.mxu0 %v1074
        %1084 = vmatprep.subr.bf16.mxu0 0
        %1085 = vmatpush1.bf16.msra.mxu0 0
        %1086 = vmatprep.subr.bf16.mxu0 0
        %1087 = vmatpush1.bf16.msra.mxu0 0
        %1088 = vmatprep.subr.bf16.mxu0 0
        %1089 = vmatpush1.bf16.msra.mxu0 0
        %1090 = vmatprep.subr.bf16.mxu0 0
        %1091 = vmatpush1.bf16.msra.mxu0 0
        %1092 = vmatprep.subr.bf16.mxu0 0
        %1093 = vmatpush1.bf16.msra.mxu0 0
        %1094 = vmatprep.subr.bf16.mxu0 0
        %1095 = vmatpush1.bf16.msra.mxu0 0
        %1096 = vmatprep.subr.bf16.mxu0 0
        %1097 = vmatpush1.bf16.msra.mxu0 0
        %1098 = vmatprep.subr.bf16.mxu0 0
        %1099 = vmatpush1.bf16.msra.mxu0 0
        %1100 = vmatprep.subr.bf16.mxu0 0
        %1101 = vmatpush1.bf16.msra.mxu0 0
        %1102 = vmatprep.subr.bf16.mxu0 0
        %1103 = vmatpush1.bf16.msra.mxu0 0
        %1104 = vmatprep.subr.bf16.mxu0 0
        %1105 = vmatpush1.bf16.msra.mxu0 0
        %1106 = vmatprep.subr.bf16.mxu0 0
        %1107 = vmatpush1.bf16.msra.mxu0 0
        %1108 = vmatprep.subr.bf16.mxu0 0
        %1109 = vmatpush1.bf16.msra.mxu0 0
        %1110 = vmatprep.subr.bf16.mxu0 0
        %1111 = vmatpush1.bf16.msra.mxu0 0
        %1112 = vmatprep.mubr.bf16.mxu0 0
        %1113 = vmatmul.mubr.bf16.gmra.mrb[0].mxu0 %v1078
        %v1114 = vpop.f32.mrb[0].mxu0
        %v1115 = vadd.f32 %v1064, %v1114
        %v1116 = vpop.f32.mrb[0].mxu0
        %v1117 = vpop.f32.mrb[0].mxu0
        %v1118 = vpop.f32.mrb[0].mxu0
        %1119 = vdwg.mxu0
        %v1120 = vunpack.c.l.bf16 %v889
        %v1121 = vadd.f32 %v1120, %v1115
        %vm1122 = vcmask 253952
        %v1123 = vsel %vm1122, %v1121, 0.0
        %1124 = vadd.xlane.f32.xlu0 %v1123
        %v1125 = vpop.xlane.xlu0 %1124
        %v1126 = vrcp.pop 32.0
        %v1127 = vmul.f32 %v1125, %v1126
        %v1128 = vsub.f32 %v1121, %v1127
        %v1129 = vmul.f32 %v1128, %v1128
        %v1130 = vsel %vm1122, %v1129, 0.0
        %1131 = vadd.xlane.f32.xlu0 %v1130
        %v1132 = vpop.xlane.xlu0 %1131
        %v1133 = vmul.f32 %v1132, %v1126
        %v1134 = vadd.f32 %v1133, 1e-12
        %v1135 = vrsqrt.pop %v1134
        %v1136 = vmul.f32 %v1128, %v1135
        %v1137 = vld [vmem:[%s14] sm:$0x1]
        %v1138 = vmul.f32 %v1136, %v1137
        %v1139 = vld [vmem:[%s15] sm:$0x1]
        %v1140 = vadd.f32 %v1138, %v1139
        %v1141 = vpack.c.bf16 %v1140, %v1140
        %v1142 = vld [vmem:[%s10] sm:$0xf]
        %v1143 = vld [vmem:[%s10 + $0x4] sm:$0xf]
        %v1144 = vld [vmem:[%s10 + $0x8] sm:$0xf]
        %v1145 = vld [vmem:[%s10 + $0xc] sm:$0xf]
        %v1146 = vld [vmem:[#allocation13] sm:$0x1]
        %v1151 = vunpack.c.l.b16 %v1142
        %v1152 = vunpack.c.l.b16 %v1143
        %v1153 = vunpack.c.l.b16 %v1144
        %v1154 = vunpack.c.l.b16 %v1145
        %v1155 = vpack.c.b16 %v1152, %v1151
        %v1156 = vpack.c.b16 %v1154, %v1153
        %v1160 = vsel %vm780, %v1141, 0
        %1162 = vmatprep.subr.bf16.mxu0 0
        %1163 = vmatpush1.bf16.msra.mxu0 %v1155
        %1164 = vmatprep.subr.bf16.mxu0 0
        %1165 = vmatpush1.bf16.msra.mxu0 %v1156
        %1166 = vmatprep.subr.bf16.mxu0 0
        %1167 = vmatpush1.bf16.msra.mxu0 0
        %1168 = vmatprep.subr.bf16.mxu0 0
        %1169 = vmatpush1.bf16.msra.mxu0 0
        %1170 = vmatprep.subr.bf16.mxu0 0
        %1171 = vmatpush1.bf16.msra.mxu0 0
        %1172 = vmatprep.subr.bf16.mxu0 0
        %1173 = vmatpush1.bf16.msra.mxu0 0
        %1174 = vmatprep.subr.bf16.mxu0 0
        %1175 = vmatpush1.bf16.msra.mxu0 0
        %1176 = vmatprep.subr.bf16.mxu0 0
        %1177 = vmatpush1.bf16.msra.mxu0 0
        %1178 = vmatprep.subr.bf16.mxu0 0
        %1179 = vmatpush1.bf16.msra.mxu0 0
        %1180 = vmatprep.subr.bf16.mxu0 0
        %1181 = vmatpush1.bf16.msra.mxu0 0
        %1182 = vmatprep.subr.bf16.mxu0 0
        %1183 = vmatpush1.bf16.msra.mxu0 0
        %1184 = vmatprep.subr.bf16.mxu0 0
        %1185 = vmatpush1.bf16.msra.mxu0 0
        %1186 = vmatprep.subr.bf16.mxu0 0
        %1187 = vmatpush1.bf16.msra.mxu0 0
        %1188 = vmatprep.subr.bf16.mxu0 0
        %1189 = vmatpush1.bf16.msra.mxu0 0
        %1190 = vmatprep.subr.bf16.mxu0 0
        %1191 = vmatpush1.bf16.msra.mxu0 0
        %1192 = vmatprep.subr.bf16.mxu0 0
        %1193 = vmatpush1.bf16.msra.mxu0 0
        %1194 = vmatprep.mubr.bf16.mxu0 0
        %1195 = vmatmul.mubr.bf16.gmra.mrb[0].mxu0 %v1160
        %v1196 = vpop.f32.mrb[0].mxu0
        %v1197 = vadd.f32 %v1146, %v1196
        %v1198 = vpop.f32.mrb[0].mxu0
        %v1199 = vpop.f32.mrb[0].mxu0
        %v1200 = vpop.f32.mrb[0].mxu0
        %1201 = vdwg.mxu0
        %v1202 = vmul.f32 %v1197, %v1197
        %v1203 = vmul.f32 %v1197, %v1202
        %v1204 = vmul.f32 %v1203, 0.044715
        %v1205 = vadd.f32 %v1197, %v1204
        %v1206 = vmul.f32 %v1205, 0.7978846
        %v1207 = vtanh.pop %v1206
        %v1208 = vadd.f32 %v1207, 1.0
        %v1209 = vmul.f32 %v1208, 0.5
        %v1210 = vmul.f32 %v1197, %v1209
        %v1211 = vpack.c.bf16 %v1210, %v1210
        %v1212 = vld [vmem:[%s12] sm:$0xf]
        %v1213 = vld [vmem:[%s12 + $0x4] sm:$0xf]
        %v1214 = vld [vmem:[%s12 + $0x8] sm:$0xf]
        %v1215 = vld [vmem:[%s12 + $0xc] sm:$0xf]
        %v1216 = vld [vmem:[%s12 + $0x10] sm:$0xf]
        %v1217 = vld [vmem:[%s12 + $0x14] sm:$0xf]
        %v1218 = vld [vmem:[%s12 + $0x18] sm:$0xf]
        %v1219 = vld [vmem:[%s12 + $0x1c] sm:$0xf]
        %v1220 = vld [vmem:[#allocation14] sm:$0x1]
        %v1229 = vunpack.c.l.b16 %v1212
        %v1230 = vunpack.c.l.b16 %v1213
        %v1231 = vunpack.c.l.b16 %v1214
        %v1232 = vunpack.c.l.b16 %v1215
        %v1233 = vunpack.c.l.b16 %v1216
        %v1234 = vunpack.c.l.b16 %v1217
        %v1235 = vunpack.c.l.b16 %v1218
        %v1236 = vunpack.c.l.b16 %v1219
        %v1237 = vpack.c.b16 %v1230, %v1229
        %v1238 = vpack.c.b16 %v1232, %v1231
        %v1239 = vpack.c.b16 %v1234, %v1233
        %v1240 = vpack.c.b16 %v1236, %v1235
        %vm1245 = vcmask 523264
        %v1247 = vsel %vm1245, %v1211, 0
        %1249 = vmatprep.subr.bf16.mxu0 0
        %1250 = vmatpush1.bf16.msra.mxu0 %v1237
        %1251 = vmatprep.subr.bf16.mxu0 0
        %1252 = vmatpush1.bf16.msra.mxu0 %v1238
        %1253 = vmatprep.subr.bf16.mxu0 0
        %1254 = vmatpush1.bf16.msra.mxu0 %v1239
        %1255 = vmatprep.subr.bf16.mxu0 0
        %1256 = vmatpush1.bf16.msra.mxu0 %v1240
        %1257 = vmatprep.subr.bf16.mxu0 0
        %1258 = vmatpush1.bf16.msra.mxu0 0
        %1259 = vmatprep.subr.bf16.mxu0 0
        %1260 = vmatpush1.bf16.msra.mxu0 0
        %1261 = vmatprep.subr.bf16.mxu0 0
        %1262 = vmatpush1.bf16.msra.mxu0 0
        %1263 = vmatprep.subr.bf16.mxu0 0
        %1264 = vmatpush1.bf16.msra.mxu0 0
        %1265 = vmatprep.subr.bf16.mxu0 0
        %1266 = vmatpush1.bf16.msra.mxu0 0
        %1267 = vmatprep.subr.bf16.mxu0 0
        %1268 = vmatpush1.bf16.msra.mxu0 0
        %1269 = vmatprep.subr.bf16.mxu0 0
        %1270 = vmatpush1.bf16.msra.mxu0 0
        %1271 = vmatprep.subr.bf16.mxu0 0
        %1272 = vmatpush1.bf16.msra.mxu0 0
        %1273 = vmatprep.subr.bf16.mxu0 0
        %1274 = vmatpush1.bf16.msra.mxu0 0
        %1275 = vmatprep.subr.bf16.mxu0 0
        %1276 = vmatpush1.bf16.msra.mxu0 0
        %1277 = vmatprep.subr.bf16.mxu0 0
        %1278 = vmatpush1.bf16.msra.mxu0 0
        %1279 = vmatprep.subr.bf16.mxu0 0
        %1280 = vmatpush1.bf16.msra.mxu0 0
        %1281 = vmatprep.mubr.bf16.mxu0 0
        %1282 = vmatmul.mubr.bf16.gmra.mrb[0].mxu0 %v1247
        %v1283 = vpop.f32.mrb[0].mxu0
        %v1284 = vadd.f32 %v1220, %v1283
        %v1285 = vpop.f32.mrb[0].mxu0
        %v1286 = vpop.f32.mrb[0].mxu0
        %v1287 = vpop.f32.mrb[0].mxu0
        %1288 = vdwg.mxu0
        %v1289 = vadd.f32 %v1140, %v1284
        %v1290 = vsel %vm1122, %v1289, 0.0
        %1291 = vadd.xlane.f32.xlu0 %v1290
        %v1292 = vpop.xlane.xlu0 %1291
        %v1293 = vmul.f32 %v1292, %v1126
        %v1294 = vsub.f32 %v1289, %v1293
        %v1295 = vmul.f32 %v1294, %v1294
        %v1296 = vsel %vm1122, %v1295, 0.0
        %1297 = vadd.xlane.f32.xlu0 %v1296
        %v1298 = vpop.xlane.xlu0 %1297
        %v1299 = vmul.f32 %v1298, %v1126
        %v1300 = vadd.f32 %v1299, 1e-12
        %v1301 = vrsqrt.pop %v1300
        %v1302 = vmul.f32 %v1294, %v1301
        %v1303 = vld [vmem:[%s16] sm:$0x1]
        %v1304 = vmul.f32 %v1302, %v1303
        %v1305 = vld [vmem:[%s17] sm:$0x1]
        %v1306 = vadd.f32 %v1304, %v1305
        %v1307 = vpack.c.bf16 %v1306, %v1306
        %v1308 = vld [vmem:[%s18] sm:$0xf]
        %v1309 = vld [vmem:[%s18 + $0x4] sm:$0xf]
        %v1310 = vld [vmem:[%s18 + $0x8] sm:$0xf]
        %v1311 = vld [vmem:[%s18 + $0xc] sm:$0xf]
        %v1312 = vld [vmem:[%s19] sm:$0x1]
        %v1317 = vunpack.c.l.b16 %v1308
        %v1318 = vunpack.c.l.b16 %v1309
        %v1319 = vunpack.c.l.b16 %v1310
        %v1320 = vunpack.c.l.b16 %v1311
        %v1321 = vpack.c.b16 %v1318, %v1317
        %v1322 = vpack.c.b16 %v1320, %v1319
        %v1326 = vsel %vm780, %v1307, 0
        %1328 = vmatprep.subr.bf16.mxu0 0
        %1329 = vmatpush1.bf16.msra.mxu0 %v1321
        %1330 = vmatprep.subr.bf16.mxu0 0
        %1331 = vmatpush1.bf16.msra.mxu0 %v1322
        %1332 = vmatprep.subr.bf16.mxu0 0
        %1333 = vmatpush1.bf16.msra.mxu0 0
        %1334 = vmatprep.subr.bf16.mxu0 0
        %1335 = vmatpush1.bf16.msra.mxu0 0
        %1336 = vmatprep.subr.bf16.mxu0 0
        %1337 = vmatpush1.bf16.msra.mxu0 0
        %1338 = vmatprep.subr.bf16.mxu0 0
        %1339 = vmatpush1.bf16.msra.mxu0 0
        %1340 = vmatprep.subr.bf16.mxu0 0
        %1341 = vmatpush1.bf16.msra.mxu0 0
        %1342 = vmatprep.subr.bf16.mxu0 0
        %1343 = vmatpush1.bf16.msra.mxu0 0
        %1344 = vmatprep.subr.bf16.mxu0 0
        %1345 = vmatpush1.bf16.msra.mxu0 0
        %1346 = vmatprep.subr.bf16.mxu0 0
        %1347 = vmatpush1.bf16.msra.mxu0 0
        %1348 = vmatprep.subr.bf16.mxu0 0
        %1349 = vmatpush1.bf16.msra.mxu0 0
        %1350 = vmatprep.subr.bf16.mxu0 0
        %1351 = vmatpush1.bf16.msra.mxu0 0
        %1352 = vmatprep.subr.bf16.mxu0 0
        %1353 = vmatpush1.bf16.msra.mxu0 0
        %1354 = vmatprep.subr.bf16.mxu0 0
        %1355 = vmatpush1.bf16.msra.mxu0 0
        %1356 = vmatprep.subr.bf16.mxu0 0
        %1357 = vmatpush1.bf16.msra.mxu0 0
        %1358 = vmatprep.subr.bf16.mxu0 0
        %1359 = vmatpush1.bf16.msra.mxu0 0
        %1360 = vmatprep.mubr.bf16.mxu0 0
        %1361 = vmatmul.mubr.bf16.gmra.mrb[0].mxu0 %v1326
        %v1362 = vpop.f32.mrb[0].mxu0
        %v1363 = vadd.f32 %v1312, %v1362
        %v1364 = vpop.f32.mrb[0].mxu0
        %v1365 = vpop.f32.mrb[0].mxu0
        %v1366 = vpop.f32.mrb[0].mxu0
        %1367 = vdwg.mxu0
        %vm1368 = vcmask 1040384
        %v1369 = vsel %vm1368, %v1363, -inf
        %1370 = vmax.xlane.f32.xlu0 %v1369
        %v1371 = vpop.xlane.xlu0 %1370
        %v1372 = vsub.f32 %v1363, %v1371
        %v1373 = vmul.f32 %v1372, 1.442695
        %v1374 = vpow.pop %v1373
        %v1375 = vsel %vm1368, %v1374, 0.0
        %1376 = vadd.xlane.f32.xlu0 %v1375
        %v1377 = vpop.xlane.xlu0 %1376
        %v1378 = vrcp.pop %v1377
        %v1379 = vmul.f32 %v1374, %v1378
        %1380 = vst [vmem:[%s754] sm:$0x1] %v1379
        %s1381 = sand.u32 %s481, 1
        %s1382 = scalar_lea.sflag [#allocation4], %s1381
        %s1383 = sand.u32 %s481, 1
        %s1384 = scalar_lea.vmem [#allocation16], %s1383
        // Predicated region
        $region133: #{tpu_custom_call.1} parent=99 // pred_check
          %p1385 = pneg %p491
        $region134: #{tpu_custom_call.1} parent=99 // pred_check_branch
          %1387 = sbr.rel (%p1385) target = $region136
        $region135: #{tpu_custom_call.1} parent=99 // pred_region
          %s1389 = ssub.s32 16, 16
          %1390 = vsyncadd %s1382, %s1389
          %s1391 = smul.addr %s43, 16
          %s1392 = scalar_lea.hbm %s20, %s1391
          %s1394 = sshll.u32 %s1384, 4
          %s1395 = int_to_ptr.vmem [resolvable:$true] %s1394
          %1397 = dma.vmem_to_hbm [thread:$0]  %s1395, 16, %s1392, %s1382
        $region136: #{tpu_custom_call.1} parent=99 // pred_fallthru
          _
      $region100: #{tpu_custom_call.1} parent=5 // pred_fallthru
        _
      %p1398 = scmp.le.s32.totalorder 2, %s38
      // Predicated region
      $region137: #{tpu_custom_call.1} parent=5 // pred_check
        %p1399 = pneg %p1398
      $region138: #{tpu_custom_call.1} parent=5 // pred_check_branch
        %1401 = sbr.rel (%p1399) target = $region140
      $region139: #{tpu_custom_call.1} parent=5 // pred_region
        %s1402 = ssub.s32 %s38, 2
        // Predicated region
        $region141: #{tpu_custom_call.1} parent=139 // pred_check
          %p1403 = pneg %p497
        $region142: #{tpu_custom_call.1} parent=139 // pred_check_branch
          %1405 = sbr.rel (%p1403) target = $region144
        $region143: #{tpu_custom_call.1} parent=139 // pred_region
          %s1406 = sand.u32 %s482, 1
          %s1407 = scalar_lea.sflag [#allocation4], %s1406
          %s1408 = sand.u32 %s482, 1
          %s1409 = scalar_lea.vmem [#allocation16], %s1408
          %1410 = dma.done %s1407, 16
        $region144: #{tpu_custom_call.1} parent=139 // pred_fallthru
          _
      $region140: #{tpu_custom_call.1} parent=5 // pred_fallthru
        _
    $region6: #{tpu_custom_call.1} parent=1 // loop_footer
      %s42 = sadd.s32 1, %s38
    $region7: #{tpu_custom_call.1} parent=1 // loop_footer_branch
      %37 = sbr.rel target = $region3
    $region8: #{tpu_custom_call.1} parent=1 // loop_exit
      _
    %1411 = vsyncpa [#allocation3], 1
    %s1412 = scalar_lea.sflag [#allocation3], 1
    %1413 = vsyncpa %s1412, 1
    %1414 = vsyncpa [#allocation6], 1
    %s1415 = scalar_lea.sflag [#allocation6], 1
    %1416 = vsyncpa %s1415, 1
    %1417 = vsyncpa [#allocation9], 1
    %1418 = vsyncpa [#allocation12], 1
    %1419 = vsyncpa [#allocation15], 1
    %1420 = vsyncpa [#allocation4], 1
    %s1421 = scalar_lea.sflag [#allocation4], 1
    %1422 = vsyncpa %s1421, 1

</llo_original>
